<compile_context>
chip_gen: v5e
topology: v5e:2x2
jax: 0.10.0
libtpu: 0.0.40
codegen_flags: <defaults>
</compile_context>

<pallas_src>
import functools
import math

import numpy as np
import jax
import jax.numpy as jnp
from jax.experimental import pallas as pl
from jax.experimental.pallas import tpu as pltpu

SHRINK_RATIO = 16
_VMEM_LIMIT = 32 * 1024 * 1024   # explicit scoped-VMEM limit (v5e default is only 16 MiB)


# ----------------------------------------------------------------------------
# Kernel A: fused encoder projection + masked temporal pooling + concept net
# ----------------------------------------------------------------------------

def _encoder_concept_kernel(x_ref, w_enc_ref, b_enc_ref, w_q_ref, b_q_ref,
                            tbl_ref, w_t_ref, b_t_ref,
                            video_ref, tmean_ref,
                            sum_v, sum_s, sum_f,
                            *, t_valid, fv, fs, ff):
    t = pl.program_id(0)
    B, tt, d = x_ref.shape

    @pl.when(t == 0)
    def _init():
        sum_v[...] = jnp.zeros_like(sum_v)
        sum_s[...] = jnp.zeros_like(sum_s)
        sum_f[...] = jnp.zeros_like(sum_f)

    # ---- FeatureEncoder stand-in: one merged bf16 matmul (MXU, f32 acc) -----
    x = x_ref[...].reshape(B * tt, d)                              # bf16
    y = jnp.dot(x, w_enc_ref[...], preferred_element_type=jnp.float32)
    y = jnp.maximum(y + b_enc_ref[...], 0.0)                       # f32
    y = y.reshape(B, tt, fv + fs + ff)

    video = y[:, :, :fv]
    slow = y[:, :, fv:fv + fs]
    fast = y[:, :, fv + fs:]

    video_ref[...] = video.astype(video_ref.dtype)                 # bf16 tile out

    # ---- masked temporal pooling, accumulated across the T grid -------------
    # slow stream = every 16th frame, fast stream = every 4th frame; rows past
    # the shrink-padded length t_valid do not contribute.
    row = t * tt + jax.lax.broadcasted_iota(jnp.int32, (tt, 1), 0)
    valid = row < t_valid
    m_v = valid.astype(jnp.float32)[None]                          # (1, tt, 1)
    m_s = jnp.logical_and(valid, (row % 16) == 0).astype(jnp.float32)[None]
    m_f = jnp.logical_and(valid, (row % 4) == 0).astype(jnp.float32)[None]

    sum_v[...] += jnp.sum(video * m_v, axis=1)
    sum_s[...] += jnp.sum(slow * m_s, axis=1)
    sum_f[...] += jnp.sum(fast * m_f, axis=1)

    # ---- ConceptNet / topic projection stand-in (finalize once) -------------
    @pl.when(t == pl.num_programs(0) - 1)
    def _finalize():
        pv = sum_v[...] * (1.0 / float(t_valid))
        ps = sum_s[...] * (1.0 / float(t_valid // 16))
        pf = sum_f[...] * (1.0 / float(t_valid // 4))
        pooled = jnp.concatenate([pv, ps, pf], axis=-1)            # (B, fv+fs+ff)
        q = jnp.dot(pooled.astype(jnp.bfloat16), w_q_ref[...],
                    preferred_element_type=jnp.float32) + b_q_ref[...]
        q = jnp.maximum(q, 0.0)                                    # (B, E)
        K, E = tbl_ref.shape
        topics = tbl_ref[...][None, :, :] + q[:, None, :]          # (B, K, E)
        tfeat = jnp.dot(topics.reshape(B * K, E).astype(jnp.bfloat16), w_t_ref[...],
                        preferred_element_type=jnp.float32) + b_t_ref[...]
        tfeat = jnp.maximum(tfeat, 0.0).reshape(B, K, -1)          # (B, K, fv)
        # mean over topics; folded into the score matmul downstream.
        tmean_ref[...] = jnp.mean(tfeat, axis=1)                   # (B, fv) f32


def encoder_concept(x_pad, w_enc, b_enc, w_q, b_q, tbl, w_t, b_t,
                    *, t_valid, tt, fv, fs, ff):
    B, t_kern, D = x_pad.shape
    K, E = tbl.shape
    f_cat = fv + fs + ff
    kernel = functools.partial(_encoder_concept_kernel,
                               t_valid=t_valid, fv=fv, fs=fs, ff=ff)
    return pl.pallas_call(
        kernel,
        out_shape=(jax.ShapeDtypeStruct((B, t_kern, fv), jnp.bfloat16),
                   jax.ShapeDtypeStruct((B, fv), jnp.float32)),
        grid_spec=pltpu.PrefetchScalarGridSpec(
            num_scalar_prefetch=0,
            grid=(t_kern // tt,),
            in_specs=[
                pl.BlockSpec((B, tt, D), lambda t: (0, t, 0)),
                pl.BlockSpec((D, f_cat), lambda t: (0, 0)),
                pl.BlockSpec((1, f_cat), lambda t: (0, 0)),
                pl.BlockSpec((f_cat, E), lambda t: (0, 0)),
                pl.BlockSpec((1, E), lambda t: (0, 0)),
                pl.BlockSpec((K, E), lambda t: (0, 0)),
                pl.BlockSpec((E, fv), lambda t: (0, 0)),
                pl.BlockSpec((1, fv), lambda t: (0, 0)),
            ],
            out_specs=[
                pl.BlockSpec((B, tt, fv), lambda t: (0, t, 0)),
                pl.BlockSpec((B, fv), lambda t: (0, 0)),
            ],
            scratch_shapes=[pltpu.VMEM((B, fv), jnp.float32),
                            pltpu.VMEM((B, fs), jnp.float32),
                            pltpu.VMEM((B, ff), jnp.float32)],
        ),
        compiler_params=pltpu.CompilerParams(
            dimension_semantics=("arbitrary",),          # pooled accumulator across T
            vmem_limit_bytes=_VMEM_LIMIT),
    )(x_pad, w_enc, b_enc, w_q, b_q, tbl, w_t, b_t)


# ----------------------------------------------------------------------------
# Kernel B: ScoreNet stand-in — frame / topic-mean similarity + sigmoid
# ----------------------------------------------------------------------------

def _score_kernel(v_ref, tmean_ref, o_ref):
    v = v_ref[...].astype(jnp.float32)                 # (B, tt, F)
    tm = tmean_ref[...]                                # (B, F) f32
    s = jnp.sum(v * tm[:, None, :], axis=-1)           # (B, tt)
    # sigmoid via EUP exp + EUP approximate reciprocal
    o_ref[...] = pl.reciprocal(1.0 + jnp.exp(-s), approx=True)


def score_net(video_features, t_mean, *, tt):
    B, t_kern, F = video_features.shape
    return pl.pallas_call(
        _score_kernel,
        out_shape=jax.ShapeDtypeStruct((B, t_kern), jnp.float32),
        grid_spec=pltpu.PrefetchScalarGridSpec(
            num_scalar_prefetch=0,
            grid=(t_kern // tt,),
            in_specs=[pl.BlockSpec((B, tt, F), lambda t: (0, t, 0)),
                      pl.BlockSpec((B, F), lambda t: (0, 0))],
            out_specs=pl.BlockSpec((B, tt), lambda t: (0, t)),
        ),
        compiler_params=pltpu.CompilerParams(
            dimension_semantics=("parallel",),
            vmem_limit_bytes=_VMEM_LIMIT),
    )(video_features, t_mean)


# ----------------------------------------------------------------------------
# Host-side glue (mirrors the PyTorch Python loops / reshapes)
# ----------------------------------------------------------------------------

def get_frame_features(batch, seg_len_np):
    """Semantics of TopicAbsentModel.get_frame_features, vectorized.

    The Python triple loop that builds the boolean mask is replaced by a
    host-side numpy flat-index construction and a SINGLE device gather.
    PyTorch's view(B, -1, D) after masked_select implicitly requires equal
    valid-frame counts per batch element.
    """
    B, S, Fm, D = batch.shape
    seg_len_np = np.asarray(seg_len_np)
    totals = seg_len_np.sum(axis=1)
    T = int(totals[0])
    assert np.all(totals == T), "equal valid-frame counts per batch element required"
    idx = np.zeros((B, T), dtype=np.int32)
    for i in range(B):
        idx[i] = np.concatenate(
            [j * Fm + np.arange(int(seg_len_np[i, j]), dtype=np.int32) for j in range(S)])
    frame_features = jnp.take_along_axis(
        batch.reshape(B, S * Fm, D), jnp.asarray(idx)[:, :, None], axis=1)   # (B, T, D)
    t_pad = math.ceil(T / SHRINK_RATIO) * SHRINK_RATIO
    return frame_features, T, t_pad


def init_params(key, feature_dim, slow_dim, fast_dim, fusion_dim,
                topic_num, topic_embedding_dim):
    ks = jax.random.split(key, 4)

    def w(k, shape, scale=0.02):
        return (scale * jax.random.normal(k, shape)).astype(jnp.bfloat16)

    f_cat = fusion_dim + slow_dim + fast_dim
    return {
        # nn.Embedding(topic_num, topic_embedding_dim), init_weight(): normal(0, 1)
        "topic_table": jax.random.normal(ks[0], (topic_num, topic_embedding_dim)).astype(jnp.float32),
        # FeatureEncoder stand-in: merged [W_video | W_slow | W_fast] projection (bf16).
        "W_enc": w(ks[1], (feature_dim, f_cat)),
        "b_enc": jnp.zeros((1, f_cat), jnp.float32),
        # ConceptNet stand-in: merged [W_qv ; W_qs ; W_qf] fusion projection (bf16).
        "W_q": w(ks[2], (f_cat, topic_embedding_dim)),
        "b_q": jnp.zeros((1, topic_embedding_dim), jnp.float32),
        # ScoreNet stand-in: topic-feature projection (bf16).
        "W_t": w(ks[3], (topic_embedding_dim, fusion_dim)),
        "b_t": jnp.zeros((1, fusion_dim), jnp.float32),
        "dims": (fusion_dim, slow_dim, fast_dim),
    }


def topic_absent_forward(params, batch, seg_len_np, concept1, concept2):
    # concept1 / concept2 are accepted (concept_dim vectors) but — like the
    # "interactivity absent" baseline stand-ins — not consumed.
    del concept1, concept2
    B, S, Fm, D = batch.shape
    fv, fs, ff = params["dims"]

    frame_features, T, t_pad = get_frame_features(batch, seg_len_np)

    # Pad the temporal axis further to a multiple of 128 so every kernel tile
    # and the score output are lane-dense; rows >= t_pad are masked out of the
    # temporal pooling and their scores are sliced away below.
    t_kern = pl.cdiv(t_pad, 128) * 128
    tt = next(c for c in (512, 256, 128) if t_kern % c == 0)

    x_pad = jnp.pad(frame_features.astype(jnp.bfloat16),
                    ((0, 0), (0, t_kern - T), (0, 0)))

    video_features, t_mean = encoder_concept(
        x_pad, params["W_enc"], params["b_enc"], params["W_q"], params["b_q"],
        params["topic_table"], params["W_t"], params["b_t"],
        t_valid=t_pad, tt=tt, fv=fv, fs=fs, ff=ff)

    score_pad = score_net(video_features, t_mean, tt=tt)    # (B, t_kern)

    topic_score = score_pad[:, :T]                          # scores for real frames
    overall_score = topic_score
    return overall_score, overall_score


# ----------------------------------------------------------------------------
# Main
# ----------------------------------------------------------------------------

if __name__ == "__main__":
    key = jax.random.PRNGKey(0)
    k_batch, k_c1, k_c2, k_param = jax.random.split(key, 4)

    # Small shapes consistent with the module interface.
    B, S, Fm, D = 2, 4, 8, 128          # batch, max_segment_num, max_frame_num, feature dim
    topic_num, topic_embedding_dim = 8, 128
    slow_dim, fast_dim, fusion_dim = 256, 128, 128
    concept_dim = 300

    batch = jax.random.normal(k_batch, (B, S, Fm, D), dtype=jnp.float32)
    # Equal total valid-frame counts per batch element (required by the
    # original view(B, -1, D) after masked_select).
    seg_len = np.array([[8, 8, 4, 4],
                        [6, 6, 6, 6]], dtype=np.int32)      # totals: 24, 24
    concept1 = jax.random.normal(k_c1, (B, concept_dim), dtype=jnp.float32)
    concept2 = jax.random.normal(k_c2, (B, concept_dim), dtype=jnp.float32)

    params = init_params(k_param, D, slow_dim, fast_dim, fusion_dim,
                         topic_num, topic_embedding_dim)

    overall_score, overall_score2 = topic_absent_forward(
        params, batch, seg_len, concept1, concept2)
    jax.block_until_ready(overall_score)
    jax.block_until_ready(overall_score2)

    assert overall_score.shape == (B, 24), overall_score.shape
    assert bool(jnp.all(jnp.isfinite(overall_score)))
    print("KERNEL_OK")
</pallas_src>

<mosaic_0001>
module attributes {stable_mosaic.version = 11 : i64} {
  func.func @_encoder_concept_kernel(%arg0: i32, %arg1: memref<2x128x128xbf16, #tpu.memory_space<vmem>>, %arg2: memref<128x512xbf16, #tpu.memory_space<vmem>>, %arg3: memref<1x512xf32, #tpu.memory_space<vmem>>, %arg4: memref<512x128xbf16, #tpu.memory_space<vmem>>, %arg5: memref<1x128xf32, #tpu.memory_space<vmem>>, %arg6: memref<8x128xf32, #tpu.memory_space<vmem>>, %arg7: memref<128x128xbf16, #tpu.memory_space<vmem>>, %arg8: memref<1x128xf32, #tpu.memory_space<vmem>>, %arg9: memref<2x128x128xbf16, #tpu.memory_space<vmem>>, %arg10: memref<2x128xf32, #tpu.memory_space<vmem>>, %arg11: memref<2x128xf32, #tpu.memory_space<vmem>>, %arg12: memref<2x256xf32, #tpu.memory_space<vmem>>, %arg13: memref<2x128xf32, #tpu.memory_space<vmem>>) attributes {dimension_semantics = [#tpu.dimension_semantics<arbitrary>], iteration_bounds = array<i64: 1>, scalar_prefetch = 0 : i64, scratch_operands = 3 : i64, tpu.core_type = #tpu.core_type<tc>, window_params = [{transform_indices = @transform_0, window_bounds = array<i64: 2, 128, 128>}, {pipeline_mode = #tpu.pipeline_mode<synchronous>, transform_indices = @transform_1, window_bounds = array<i64: 128, 512>}, {pipeline_mode = #tpu.pipeline_mode<synchronous>, transform_indices = @transform_2, window_bounds = array<i64: 1, 512>}, {pipeline_mode = #tpu.pipeline_mode<synchronous>, transform_indices = @transform_3, window_bounds = array<i64: 512, 128>}, {pipeline_mode = #tpu.pipeline_mode<synchronous>, transform_indices = @transform_4, window_bounds = array<i64: 1, 128>}, {pipeline_mode = #tpu.pipeline_mode<synchronous>, transform_indices = @transform_5, window_bounds = array<i64: 8, 128>}, {pipeline_mode = #tpu.pipeline_mode<synchronous>, transform_indices = @transform_6, window_bounds = array<i64: 128, 128>}, {pipeline_mode = #tpu.pipeline_mode<synchronous>, transform_indices = @transform_7, window_bounds = array<i64: 1, 128>}, {transform_indices = @transform_8, window_bounds = array<i64: 2, 128, 128>}, {pipeline_mode = #tpu.pipeline_mode<synchronous>, transform_indices = @transform_9, window_bounds = array<i64: 2, 128>}]} {
    %c0_i32 = arith.constant 0 : i32
    %0 = arith.cmpi eq, %arg0, %c0_i32 : i32
    %1 = arith.extui %0 : i1 to i32
    %c0_i32_0 = arith.constant 0 : i32
    %2 = arith.cmpi ne, %1, %c0_i32_0 : i32
    scf.if %2 {
      %cst_39 = arith.constant 0.000000e+00 : f32
      %92 = vector.broadcast %cst_39 : f32 to vector<2x128xf32>
      %c0_40 = arith.constant 0 : index
      %c0_41 = arith.constant 0 : index
      %93 = vector.load %arg11[%c0_40, %c0_41] : memref<2x128xf32, #tpu.memory_space<vmem>>, vector<2x128xf32>
      tpu.vector_store %arg11[%c0_40, %c0_41], %92 {strides = array<i32>} : memref<2x128xf32, #tpu.memory_space<vmem>>, vector<2x128xf32>,
      %cst_42 = arith.constant 0.000000e+00 : f32
      %94 = vector.broadcast %cst_42 : f32 to vector<2x256xf32>
      %c0_43 = arith.constant 0 : index
      %c0_44 = arith.constant 0 : index
      %95 = vector.load %arg12[%c0_43, %c0_44] : memref<2x256xf32, #tpu.memory_space<vmem>>, vector<2x256xf32>
      tpu.vector_store %arg12[%c0_43, %c0_44], %94 {strides = array<i32>} : memref<2x256xf32, #tpu.memory_space<vmem>>, vector<2x256xf32>,
      %cst_45 = arith.constant 0.000000e+00 : f32
      %96 = vector.broadcast %cst_45 : f32 to vector<2x128xf32>
      %c0_46 = arith.constant 0 : index
      %c0_47 = arith.constant 0 : index
      %97 = vector.load %arg13[%c0_46, %c0_47] : memref<2x128xf32, #tpu.memory_space<vmem>>, vector<2x128xf32>
      tpu.vector_store %arg13[%c0_46, %c0_47], %96 {strides = array<i32>} : memref<2x128xf32, #tpu.memory_space<vmem>>, vector<2x128xf32>,
    } else {
    }
    %c0 = arith.constant 0 : index
    %c0_1 = arith.constant 0 : index
    %c0_2 = arith.constant 0 : index
    %3 = vector.load %arg1[%c0, %c0_1, %c0_2] : memref<2x128x128xbf16, #tpu.memory_space<vmem>>, vector<2x128x128xbf16>
    %4 = vector.shape_cast %3 : vector<2x128x128xbf16> to vector<256x128xbf16>
    %c0_3 = arith.constant 0 : index
    %c0_4 = arith.constant 0 : index
    %5 = vector.load %arg2[%c0_3, %c0_4] : memref<128x512xbf16, #tpu.memory_space<vmem>>, vector<128x512xbf16>
    %cst = arith.constant dense<0.000000e+00> : vector<256x512xf32>
    %6 = tpu.matmul %4, %5, %cst {dimension_numbers = #tpu.dot_dimension_numbers<[1], [0], [0], [1], [0, 0, 1, 1], [], []>} : vector<256x128xbf16>, vector<128x512xbf16>, vector<256x512xf32> -> vector<256x512xf32>
    %c0_5 = arith.constant 0 : index
    %c0_6 = arith.constant 0 : index
    %7 = vector.load %arg3[%c0_5, %c0_6] : memref<1x512xf32, #tpu.memory_space<vmem>>, vector<1x512xf32>
    %8 = vector.broadcast %7 : vector<1x512xf32> to vector<256x512xf32>
    %9 = arith.addf %6, %8 : vector<256x512xf32>
    %cst_7 = arith.constant 0.000000e+00 : f32
    %10 = vector.broadcast %cst_7 : f32 to vector<256x512xf32>
    %11 = arith.maximumf %9, %10 : vector<256x512xf32>
    %12 = vector.shape_cast %11 : vector<256x512xf32> to vector<2x128x512xf32>
    %13 = vector.extract_strided_slice %12 {offsets = [0, 0, 0], sizes = [2, 128, 128], strides = [1, 1, 1]} : vector<2x128x512xf32> to vector<2x128x128xf32>
    %14 = vector.extract_strided_slice %12 {offsets = [0, 0, 128], sizes = [2, 128, 256], strides = [1, 1, 1]} : vector<2x128x512xf32> to vector<2x128x256xf32>
    %15 = vector.extract_strided_slice %12 {offsets = [0, 0, 384], sizes = [2, 128, 128], strides = [1, 1, 1]} : vector<2x128x512xf32> to vector<2x128x128xf32>
    %16 = arith.truncf %13 : vector<2x128x128xf32> to vector<2x128x128xbf16>
    %c0_8 = arith.constant 0 : index
    %c0_9 = arith.constant 0 : index
    %c0_10 = arith.constant 0 : index
    %17 = vector.load %arg9[%c0_8, %c0_9, %c0_10] : memref<2x128x128xbf16, #tpu.memory_space<vmem>>, vector<2x128x128xbf16>
    tpu.vector_store %arg9[%c0_8, %c0_9, %c0_10], %16 {strides = array<i32>} : memref<2x128x128xbf16, #tpu.memory_space<vmem>>, vector<2x128x128xbf16>,
    %c128_i32 = arith.constant 128 : i32
    %18 = arith.muli %arg0, %c128_i32 : i32
    %19 = tpu.iota {dimensions = array<i32: 0>} : vector<128x1xi32>
    %20 = vector.broadcast %18 : i32 to vector<128x1xi32>
    %21 = arith.addi %20, %19 : vector<128x1xi32>
    %c32_i32 = arith.constant 32 : i32
    %22 = vector.broadcast %c32_i32 : i32 to vector<128x1xi32>
    %23 = arith.cmpi slt, %21, %22 : vector<128x1xi32>
    %24 = arith.extui %23 : vector<128x1xi1> to vector<128x1xi32>
    %25 = arith.sitofp %24 : vector<128x1xi32> to vector<128x1xf32>
    %26 = vector.shape_cast %25 : vector<128x1xf32> to vector<1x128x1xf32>
    %c16_i32 = arith.constant 16 : i32
    %c0_i32_11 = arith.constant 0 : i32
    %27 = arith.cmpi eq, %c16_i32, %c0_i32_11 : i32
    %c1_i32 = arith.constant 1 : i32
    %28 = arith.select %27, %c1_i32, %c16_i32 : i32
    %29 = vector.broadcast %28 : i32 to vector<128x1xi32>
    %30 = arith.remsi %21, %29 : vector<128x1xi32>
    %c0_i32_12 = arith.constant 0 : i32
    %31 = vector.broadcast %c0_i32_12 : i32 to vector<128x1xi32>
    %32 = arith.cmpi ne, %30, %31 : vector<128x1xi32>
    %c0_i32_13 = arith.constant 0 : i32
    %33 = vector.broadcast %c0_i32_13 : i32 to vector<128x1xi32>
    %34 = arith.cmpi slt, %30, %33 : vector<128x1xi32>
    %c0_i32_14 = arith.constant 0 : i32
    %35 = arith.cmpi slt, %28, %c0_i32_14 : i32
    %36 = vector.broadcast %35 : i1 to vector<128x1xi1>
    %37 = vector.broadcast %36 : vector<128x1xi1> to vector<128x1xi1>
    %38 = arith.xori %34, %37 : vector<128x1xi1>
    %39 = arith.andi %38, %32 : vector<128x1xi1>
    %40 = vector.broadcast %28 : i32 to vector<128x1xi32>
    %41 = arith.addi %30, %40 : vector<128x1xi32>
    %42 = arith.select %39, %41, %30 : vector<128x1xi1>, vector<128x1xi32>
    %c0_i32_15 = arith.constant 0 : i32
    %43 = vector.broadcast %c0_i32_15 : i32 to vector<128x1xi32>
    %44 = arith.cmpi eq, %42, %43 : vector<128x1xi32>
    %45 = arith.andi %23, %44 : vector<128x1xi1>
    %46 = arith.extui %45 : vector<128x1xi1> to vector<128x1xi32>
    %47 = arith.sitofp %46 : vector<128x1xi32> to vector<128x1xf32>
    %48 = vector.shape_cast %47 : vector<128x1xf32> to vector<1x128x1xf32>
    %c4_i32 = arith.constant 4 : i32
    %c0_i32_16 = arith.constant 0 : i32
    %49 = arith.cmpi eq, %c4_i32, %c0_i32_16 : i32
    %c1_i32_17 = arith.constant 1 : i32
    %50 = arith.select %49, %c1_i32_17, %c4_i32 : i32
    %51 = vector.broadcast %50 : i32 to vector<128x1xi32>
    %52 = arith.remsi %21, %51 : vector<128x1xi32>
    %c0_i32_18 = arith.constant 0 : i32
    %53 = vector.broadcast %c0_i32_18 : i32 to vector<128x1xi32>
    %54 = arith.cmpi ne, %52, %53 : vector<128x1xi32>
    %c0_i32_19 = arith.constant 0 : i32
    %55 = vector.broadcast %c0_i32_19 : i32 to vector<128x1xi32>
    %56 = arith.cmpi slt, %52, %55 : vector<128x1xi32>
    %c0_i32_20 = arith.constant 0 : i32
    %57 = arith.cmpi slt, %50, %c0_i32_20 : i32
    %58 = vector.broadcast %57 : i1 to vector<128x1xi1>
    %59 = vector.broadcast %58 : vector<128x1xi1> to vector<128x1xi1>
    %60 = arith.xori %56, %59 : vector<128x1xi1>
    %61 = arith.andi %60, %54 : vector<128x1xi1>
    %62 = vector.broadcast %50 : i32 to vector<128x1xi32>
    %63 = arith.addi %52, %62 : vector<128x1xi32>
    %64 = arith.select %61, %63, %52 : vector<128x1xi1>, vector<128x1xi32>
    %c0_i32_21 = arith.constant 0 : i32
    %65 = vector.broadcast %c0_i32_21 : i32 to vector<128x1xi32>
    %66 = arith.cmpi eq, %64, %65 : vector<128x1xi32>
    %67 = arith.andi %23, %66 : vector<128x1xi1>
    %68 = arith.extui %67 : vector<128x1xi1> to vector<128x1xi32>
    %69 = arith.sitofp %68 : vector<128x1xi32> to vector<128x1xf32>
    %70 = vector.shape_cast %69 : vector<128x1xf32> to vector<1x128x1xf32>
    %c0_22 = arith.constant 0 : index
    %c0_23 = arith.constant 0 : index
    %71 = vector.load %arg11[%c0_22, %c0_23] : memref<2x128xf32, #tpu.memory_space<vmem>>, vector<2x128xf32>
    %72 = vector.broadcast %26 : vector<1x128x1xf32> to vector<2x128x128xf32>
    %73 = arith.mulf %13, %72 : vector<2x128x128xf32>
    %cst_24 = arith.constant dense<0.000000e+00> : vector<2x128xf32>
    %74 = vector.multi_reduction <add>, %73, %cst_24 [1] : vector<2x128x128xf32> to vector<2x128xf32>
    %75 = arith.addf %71, %74 : vector<2x128xf32>
    %c0_25 = arith.constant 0 : index
    %c0_26 = arith.constant 0 : index
    %76 = vector.load %arg11[%c0_25, %c0_26] : memref<2x128xf32, #tpu.memory_space<vmem>>, vector<2x128xf32>
    tpu.vector_store %arg11[%c0_25, %c0_26], %75 {strides = array<i32>} : memref<2x128xf32, #tpu.memory_space<vmem>>, vector<2x128xf32>,
    %c0_27 = arith.constant 0 : index
    %c0_28 = arith.constant 0 : index
    %77 = vector.load %arg12[%c0_27, %c0_28] : memref<2x256xf32, #tpu.memory_space<vmem>>, vector<2x256xf32>
    %78 = vector.broadcast %48 : vector<1x128x1xf32> to vector<2x128x256xf32>
    %79 = arith.mulf %14, %78 : vector<2x128x256xf32>
    %cst_29 = arith.constant dense<0.000000e+00> : vector<2x256xf32>
    %80 = vector.multi_reduction <add>, %79, %cst_29 [1] : vector<2x128x256xf32> to vector<2x256xf32>
    %81 = arith.addf %77, %80 : vector<2x256xf32>
    %c0_30 = arith.constant 0 : index
    %c0_31 = arith.constant 0 : index
    %82 = vector.load %arg12[%c0_30, %c0_31] : memref<2x256xf32, #tpu.memory_space<vmem>>, vector<2x256xf32>
    tpu.vector_store %arg12[%c0_30, %c0_31], %81 {strides = array<i32>} : memref<2x256xf32, #tpu.memory_space<vmem>>, vector<2x256xf32>,
    %c0_32 = arith.constant 0 : index
    %c0_33 = arith.constant 0 : index
    %83 = vector.load %arg13[%c0_32, %c0_33] : memref<2x128xf32, #tpu.memory_space<vmem>>, vector<2x128xf32>
    %84 = vector.broadcast %70 : vector<1x128x1xf32> to vector<2x128x128xf32>
    %85 = arith.mulf %15, %84 : vector<2x128x128xf32>
    %cst_34 = arith.constant dense<0.000000e+00> : vector<2x128xf32>
    %86 = vector.multi_reduction <add>, %85, %cst_34 [1] : vector<2x128x128xf32> to vector<2x128xf32>
    %87 = arith.addf %83, %86 : vector<2x128xf32>
    %c0_35 = arith.constant 0 : index
    %c0_36 = arith.constant 0 : index
    %88 = vector.load %arg13[%c0_35, %c0_36] : memref<2x128xf32, #tpu.memory_space<vmem>>, vector<2x128xf32>
    tpu.vector_store %arg13[%c0_35, %c0_36], %87 {strides = array<i32>} : memref<2x128xf32, #tpu.memory_space<vmem>>, vector<2x128xf32>,
    %c0_i32_37 = arith.constant 0 : i32
    %89 = arith.cmpi eq, %arg0, %c0_i32_37 : i32
    %90 = arith.extui %89 : i1 to i32
    %c0_i32_38 = arith.constant 0 : i32
    %91 = arith.cmpi ne, %90, %c0_i32_38 : i32
    scf.if %91 {
      %c0_39 = arith.constant 0 : index
      %c0_40 = arith.constant 0 : index
      %92 = vector.load %arg11[%c0_39, %c0_40] : memref<2x128xf32, #tpu.memory_space<vmem>>, vector<2x128xf32>
      %cst_41 = arith.constant 3.125000e-02 : f32
      %93 = vector.broadcast %cst_41 : f32 to vector<2x128xf32>
      %94 = arith.mulf %92, %93 : vector<2x128xf32>
      %c0_42 = arith.constant 0 : index
      %c0_43 = arith.constant 0 : index
      %95 = vector.load %arg12[%c0_42, %c0_43] : memref<2x256xf32, #tpu.memory_space<vmem>>, vector<2x256xf32>
      %cst_44 = arith.constant 5.000000e-01 : f32
      %96 = vector.broadcast %cst_44 : f32 to vector<2x256xf32>
      %97 = arith.mulf %95, %96 : vector<2x256xf32>
      %c0_45 = arith.constant 0 : index
      %c0_46 = arith.constant 0 : index
      %98 = vector.load %arg13[%c0_45, %c0_46] : memref<2x128xf32, #tpu.memory_space<vmem>>, vector<2x128xf32>
      %cst_47 = arith.constant 1.250000e-01 : f32
      %99 = vector.broadcast %cst_47 : f32 to vector<2x128xf32>
      %100 = arith.mulf %98, %99 : vector<2x128xf32>
      %101 = tpu.concatenate %94, %97, %100 in 1 : vector<2x128xf32>, vector<2x256xf32>, vector<2x128xf32> -> vector<2x512xf32>
      %102 = arith.truncf %101 : vector<2x512xf32> to vector<2x512xbf16>
      %c0_48 = arith.constant 0 : index
      %c0_49 = arith.constant 0 : index
      %103 = vector.load %arg4[%c0_48, %c0_49] : memref<512x128xbf16, #tpu.memory_space<vmem>>, vector<512x128xbf16>
      %cst_50 = arith.constant dense<0.000000e+00> : vector<2x128xf32>
      %104 = tpu.matmul %102, %103, %cst_50 {dimension_numbers = #tpu.dot_dimension_numbers<[1], [0], [0], [1], [0, 0, 1, 1], [], []>} : vector<2x512xbf16>, vector<512x128xbf16>, vector<2x128xf32> -> vector<2x128xf32>
      %c0_51 = arith.constant 0 : index
      %c0_52 = arith.constant 0 : index
      %105 = vector.load %arg5[%c0_51, %c0_52] : memref<1x128xf32, #tpu.memory_space<vmem>>, vector<1x128xf32>
      %106 = vector.broadcast %105 : vector<1x128xf32> to vector<2x128xf32>
      %107 = arith.addf %104, %106 : vector<2x128xf32>
      %cst_53 = arith.constant 0.000000e+00 : f32
      %108 = vector.broadcast %cst_53 : f32 to vector<2x128xf32>
      %109 = arith.maximumf %107, %108 : vector<2x128xf32>
      %c0_54 = arith.constant 0 : index
      %c0_55 = arith.constant 0 : index
      %110 = vector.load %arg6[%c0_54, %c0_55] : memref<8x128xf32, #tpu.memory_space<vmem>>, vector<8x128xf32>
      %111 = vector.shape_cast %110 : vector<8x128xf32> to vector<1x8x128xf32>
      %112 = vector.shape_cast %109 : vector<2x128xf32> to vector<2x1x128xf32>
      %113 = vector.broadcast %111 : vector<1x8x128xf32> to vector<2x8x128xf32>
      %114 = vector.broadcast %112 : vector<2x1x128xf32> to vector<2x8x128xf32>
      %115 = arith.addf %113, %114 : vector<2x8x128xf32>
      %116 = vector.shape_cast %115 : vector<2x8x128xf32> to vector<16x128xf32>
      %117 = arith.truncf %116 : vector<16x128xf32> to vector<16x128xbf16>
      %c0_56 = arith.constant 0 : index
      %c0_57 = arith.constant 0 : index
      %118 = vector.load %arg7[%c0_56, %c0_57] : memref<128x128xbf16, #tpu.memory_space<vmem>>, vector<128x128xbf16>
      %cst_58 = arith.constant dense<0.000000e+00> : vector<16x128xf32>
      %119 = tpu.matmul %117, %118, %cst_58 {dimension_numbers = #tpu.dot_dimension_numbers<[1], [0], [0], [1], [0, 0, 1, 1], [], []>} : vector<16x128xbf16>, vector<128x128xbf16>, vector<16x128xf32> -> vector<16x128xf32>
      %c0_59 = arith.constant 0 : index
      %c0_60 = arith.constant 0 : index
      %120 = vector.load %arg8[%c0_59, %c0_60] : memref<1x128xf32, #tpu.memory_space<vmem>>, vector<1x128xf32>
      %121 = vector.broadcast %120 : vector<1x128xf32> to vector<16x128xf32>
      %122 = arith.addf %119, %121 : vector<16x128xf32>
      %cst_61 = arith.constant 0.000000e+00 : f32
      %123 = vector.broadcast %cst_61 : f32 to vector<16x128xf32>
      %124 = arith.maximumf %122, %123 : vector<16x128xf32>
      %125 = vector.shape_cast %124 : vector<16x128xf32> to vector<2x8x128xf32>
      %cst_62 = arith.constant dense<0.000000e+00> : vector<2x128xf32>
      %126 = vector.multi_reduction <add>, %125, %cst_62 [1] : vector<2x8x128xf32> to vector<2x128xf32>
      %cst_63 = arith.constant 8.000000e+00 : f32
      %127 = vector.broadcast %cst_63 : f32 to vector<2x128xf32>
      %128 = arith.divf %126, %127 : vector<2x128xf32>
      %c0_64 = arith.constant 0 : index
      %c0_65 = arith.constant 0 : index
      %129 = vector.load %arg10[%c0_64, %c0_65] : memref<2x128xf32, #tpu.memory_space<vmem>>, vector<2x128xf32>
      tpu.vector_store %arg10[%c0_64, %c0_65], %128 {strides = array<i32>} : memref<2x128xf32, #tpu.memory_space<vmem>>, vector<2x128xf32>,
    } else {
    }
    return
  }
  func.func @transform_0(%arg0: i32) -> (i32, i32, i32) {
    %c0_i32 = arith.constant 0 : i32
    %c0_i32_0 = arith.constant 0 : i32
    %c0_i32_1 = arith.constant 0 : i32
    return %c0_i32, %arg0, %c0_i32_0 : i32, i32, i32
  }
  func.func @transform_1(%arg0: i32) -> (i32, i32) {
    %c0_i32 = arith.constant 0 : i32
    %c0_i32_0 = arith.constant 0 : i32
    %c0_i32_1 = arith.constant 0 : i32
    return %c0_i32, %c0_i32_0 : i32, i32
  }
  func.func @transform_2(%arg0: i32) -> (i32, i32) {
    %c0_i32 = arith.constant 0 : i32
    %c0_i32_0 = arith.constant 0 : i32
    %c0_i32_1 = arith.constant 0 : i32
    return %c0_i32, %c0_i32_0 : i32, i32
  }
  func.func @transform_3(%arg0: i32) -> (i32, i32) {
    %c0_i32 = arith.constant 0 : i32
    %c0_i32_0 = arith.constant 0 : i32
    %c0_i32_1 = arith.constant 0 : i32
    return %c0_i32, %c0_i32_0 : i32, i32
  }
  func.func @transform_4(%arg0: i32) -> (i32, i32) {
    %c0_i32 = arith.constant 0 : i32
    %c0_i32_0 = arith.constant 0 : i32
    %c0_i32_1 = arith.constant 0 : i32
    return %c0_i32, %c0_i32_0 : i32, i32
  }
  func.func @transform_5(%arg0: i32) -> (i32, i32) {
    %c0_i32 = arith.constant 0 : i32
    %c0_i32_0 = arith.constant 0 : i32
    %c0_i32_1 = arith.constant 0 : i32
    return %c0_i32, %c0_i32_0 : i32, i32
  }
  func.func @transform_6(%arg0: i32) -> (i32, i32) {
    %c0_i32 = arith.constant 0 : i32
    %c0_i32_0 = arith.constant 0 : i32
    %c0_i32_1 = arith.constant 0 : i32
    return %c0_i32, %c0_i32_0 : i32, i32
  }
  func.func @transform_7(%arg0: i32) -> (i32, i32) {
    %c0_i32 = arith.constant 0 : i32
    %c0_i32_0 = arith.constant 0 : i32
    %c0_i32_1 = arith.constant 0 : i32
    return %c0_i32, %c0_i32_0 : i32, i32
  }
  func.func @transform_8(%arg0: i32) -> (i32, i32, i32) {
    %c0_i32 = arith.constant 0 : i32
    %c0_i32_0 = arith.constant 0 : i32
    %c0_i32_1 = arith.constant 0 : i32
    return %c0_i32, %arg0, %c0_i32_0 : i32, i32, i32
  }
  func.func @transform_9(%arg0: i32) -> (i32, i32) {
    %c0_i32 = arith.constant 0 : i32
    %c0_i32_0 = arith.constant 0 : i32
    %c0_i32_1 = arith.constant 0 : i32
    return %c0_i32, %c0_i32_0 : i32, i32
  }
}

</mosaic_0001>

<llo_original>
// kernel: tpu_custom_call.1
$region0: #{tpu_custom_call.1}
  #allocation0 [shape = 'u32[]', space=smem, size = 0x4, offset = 0x4, fixed_abs, tag = 'smem constant byte address 0x4 - core index']
  #allocation1 [shape = 'u32[72,128]{1,0:T(1,128)}', space=vmem, size = 0x9000, scoped, tag = 'internal scratch']
  #allocation2 [shape = 'f32[2,128]{1,0:T(2,128)}', space=vmem, size = 0x400, scoped, tag = 'scratch operand']
  #allocation3 [shape = 'f32[2,256]{1,0:T(2,128)}', space=vmem, size = 0x800, scoped, tag = 'scratch operand']
  #allocation4 [shape = 'f32[2,128]{1,0:T(2,128)}', space=vmem, size = 0x400, scoped, tag = 'scratch operand']
  %s0 = inlined_call_operand.hbm [shape: bf16[2,128,128], index: 0, kind: input, shape index: {}]
  %s1 = inlined_call_operand.hbm [shape: bf16[128,512], index: 1, kind: input, shape index: {}]
  %s2 = inlined_call_operand.hbm [shape: f32[1,512], index: 2, kind: input, shape index: {}]
  %s3 = inlined_call_operand.hbm [shape: bf16[512,128], index: 3, kind: input, shape index: {}]
  %s4 = inlined_call_operand.vmem [shape: f32[1,128], index: 4, kind: input, shape index: {}]
  %s5 = inlined_call_operand.hbm [shape: f32[8,128], index: 5, kind: input, shape index: {}]
  %s6 = inlined_call_operand.hbm [shape: bf16[128,128], index: 6, kind: input, shape index: {}]
  %s7 = inlined_call_operand.vmem [shape: f32[1,128], index: 7, kind: input, shape index: {}]
  %s8 = inlined_call_operand.hbm [shape: bf16[2,128,128], index: 8, kind: output, shape index: {0}]
  %s9 = inlined_call_operand.hbm [shape: f32[2,128], index: 9, kind: output, shape index: {1}]
  %10 = xla_tuple %s8, %s9
  %s11 = sld [smem:[#allocation0]]
  $region82: #{tpu_custom_call.1} parent=0
    _
  %s13 = ssub.s32 1, %s11
  %s14 = scalar_select 0, %s13, %s11
  $region1: #{tpu_custom_call.1} parent=0
    #allocation5 [shape = 'u8[65536]{0}', space=vmem, size = 0x10000, scoped, tag = 'input window, operand 0, single buffered']
    #allocation6 [shape = 's32[1]{0}', space=sflag, size = 0x4, scoped, tag = 'scoped memory for tpu_custom_call.1']
    #allocation7 [shape = 's32[1]{0}', space=sflag, size = 0x4, scoped, tag = 'scoped memory for tpu_custom_call.1']
    #allocation8 [shape = 'u8[131072]{0}', space=vmem, size = 0x20000, scoped, tag = 'input window, operand 1, single buffered']
    #allocation9 [shape = 's32[1]{0}', space=sflag, size = 0x4, scoped, tag = 'scoped memory for tpu_custom_call.1']
    #allocation10 [shape = 'u8[2048]{0}', space=vmem, size = 0x800, scoped, tag = 'input window, operand 2, single buffered']
    #allocation11 [shape = 'u8[131072]{0}', space=vmem, size = 0x20000, scoped, tag = 'input window, operand 3, single buffered']
    #allocation12 [shape = 's32[1]{0}', space=sflag, size = 0x4, scoped, tag = 'scoped memory for tpu_custom_call.1']
    #allocation13 [shape = 'u8[4096]{0}', space=vmem, size = 0x1000, scoped, tag = 'input window, operand 5, single buffered']
    #allocation14 [shape = 'u8[32768]{0}', space=vmem, size = 0x8000, scoped, tag = 'input window, operand 6, single buffered']
    #allocation15 [shape = 's32[1]{0}', space=sflag, size = 0x4, scoped, tag = 'scoped memory for tpu_custom_call.1']
    #allocation16 [shape = 'u8[65536]{0}', space=vmem, size = 0x10000, scoped, tag = 'output window, operand 0, single buffered']
    #allocation17 [shape = 'u8[1024]{0}', space=vmem, size = 0x400, scoped, tag = 'output window, operand 1, single buffered']
    #allocation18 [shape = 's32[1]{0}', space=sflag, size = 0x4, scoped, tag = 'scoped memory for tpu_custom_call.1']
    %15 = vsyncpa [#allocation6], 0
    %16 = vsyncpa [#allocation9], 0
    %17 = vsyncpa [#allocation12], 0
    %18 = vsyncpa [#allocation15], 0
    %19 = vsyncpa [#allocation7], 0
    %20 = vsyncpa [#allocation18], 0
    // Predicated region
    $region2: #{tpu_custom_call.1} parent=1 // pred_check
      _
    $region3: #{tpu_custom_call.1} parent=1 // pred_check_branch
      %22 = sbr.rel (0) target = $region5
    $region4: #{tpu_custom_call.1} parent=1 // pred_region
      %24 = vsyncadd [#allocation6], 0
      %s25 = sshll.u32 %s0, 4
      %s26 = int_to_ptr.hbm [resolvable:$true] %s25
      %s27 = sshll.u32 [#allocation5], 4
      %s28 = int_to_ptr.vmem [resolvable:$true] %s27
      %33 = dma.hbm_to_vmem [thread:$0]  %s26, 2048, %s28, [#allocation6], 64, 64, 4
    $region5: #{tpu_custom_call.1} parent=1 // pred_fallthru
      _
    // Predicated region
    $region6: #{tpu_custom_call.1} parent=1 // pred_check
      _
    $region7: #{tpu_custom_call.1} parent=1 // pred_check_branch
      %35 = sbr.rel (0) target = $region9
    $region8: #{tpu_custom_call.1} parent=1 // pred_region
      %37 = vsyncadd [#allocation9], 0
      %s38 = sshll.u32 %s1, 4
      %s39 = int_to_ptr.hbm [resolvable:$true] %s38
      %s40 = sshll.u32 [#allocation8], 4
      %s41 = int_to_ptr.vmem [resolvable:$true] %s40
      %46 = dma.hbm_to_vmem [thread:$0]  %s39, 4096, %s41, [#allocation9], 256, 256, 16
    $region9: #{tpu_custom_call.1} parent=1 // pred_fallthru
      _
    // Predicated region
    $region10: #{tpu_custom_call.1} parent=1 // pred_check
      _
    $region11: #{tpu_custom_call.1} parent=1 // pred_check_branch
      %48 = sbr.rel (0) target = $region13
    $region12: #{tpu_custom_call.1} parent=1 // pred_region
      %50 = vsyncadd [#allocation9], 0
      %s52 = sshll.u32 %s2, 4
      %s53 = int_to_ptr.hbm [resolvable:$true] %s52
      %s54 = sshll.u32 [#allocation10], 4
      %s55 = int_to_ptr.vmem [resolvable:$true] %s54
      %57 = dma.hbm_to_vmem [thread:$0]  %s53, 64, %s55, [#allocation9]
    $region13: #{tpu_custom_call.1} parent=1 // pred_fallthru
      _
    // Predicated region
    $region14: #{tpu_custom_call.1} parent=1 // pred_check
      _
    $region15: #{tpu_custom_call.1} parent=1 // pred_check_branch
      %59 = sbr.rel (0) target = $region17
    $region16: #{tpu_custom_call.1} parent=1 // pred_region
      %61 = vsyncadd [#allocation12], 0
      %s62 = sshll.u32 %s3, 4
      %s63 = int_to_ptr.hbm [resolvable:$true] %s62
      %s64 = sshll.u32 [#allocation11], 4
      %s65 = int_to_ptr.vmem [resolvable:$true] %s64
      %70 = dma.hbm_to_vmem [thread:$0]  %s63, 4096, %s65, [#allocation12], 64, 64, 4
    $region17: #{tpu_custom_call.1} parent=1 // pred_fallthru
      _
    // Predicated region
    $region18: #{tpu_custom_call.1} parent=1 // pred_check
      _
    $region19: #{tpu_custom_call.1} parent=1 // pred_check_branch
      %72 = sbr.rel (0) target = $region21
    $region20: #{tpu_custom_call.1} parent=1 // pred_region
      _
    $region21: #{tpu_custom_call.1} parent=1 // pred_fallthru
      _
    // Predicated region
    $region22: #{tpu_custom_call.1} parent=1 // pred_check
      _
    $region23: #{tpu_custom_call.1} parent=1 // pred_check_branch
      %74 = sbr.rel (0) target = $region25
    $region24: #{tpu_custom_call.1} parent=1 // pred_region
      %76 = vsyncadd [#allocation12], 0
      %s78 = sshll.u32 %s5, 4
      %s79 = int_to_ptr.hbm [resolvable:$true] %s78
      %s80 = sshll.u32 [#allocation13], 4
      %s81 = int_to_ptr.vmem [resolvable:$true] %s80
      %83 = dma.hbm_to_vmem [thread:$0]  %s79, 128, %s81, [#allocation12]
    $region25: #{tpu_custom_call.1} parent=1 // pred_fallthru
      _
    // Predicated region
    $region26: #{tpu_custom_call.1} parent=1 // pred_check
      _
    $region27: #{tpu_custom_call.1} parent=1 // pred_check_branch
      %85 = sbr.rel (0) target = $region29
    $region28: #{tpu_custom_call.1} parent=1 // pred_region
      %87 = vsyncadd [#allocation15], 0
      %s88 = sshll.u32 %s6, 4
      %s89 = int_to_ptr.hbm [resolvable:$true] %s88
      %s90 = sshll.u32 [#allocation14], 4
      %s91 = int_to_ptr.vmem [resolvable:$true] %s90
      %96 = dma.hbm_to_vmem [thread:$0]  %s89, 1024, %s91, [#allocation15], 64, 64, 4
    $region29: #{tpu_custom_call.1} parent=1 // pred_fallthru
      _
    // Predicated region
    $region30: #{tpu_custom_call.1} parent=1 // pred_check
      _
    $region31: #{tpu_custom_call.1} parent=1 // pred_check_branch
      %98 = sbr.rel (0) target = $region33
    $region32: #{tpu_custom_call.1} parent=1 // pred_region
      _
    $region33: #{tpu_custom_call.1} parent=1 // pred_fallthru
      _
    // Predicated region
    $region34: #{tpu_custom_call.1} parent=1 // pred_check
      _
    $region35: #{tpu_custom_call.1} parent=1 // pred_check_branch
      %100 = sbr.rel (0) target = $region37
    $region36: #{tpu_custom_call.1} parent=1 // pred_region
      %102 = dma.done [#allocation6], 2048
    $region37: #{tpu_custom_call.1} parent=1 // pred_fallthru
      _
    // Predicated region
    $region38: #{tpu_custom_call.1} parent=1 // pred_check
      _
    $region39: #{tpu_custom_call.1} parent=1 // pred_check_branch
      %104 = sbr.rel (0) target = $region41
    $region40: #{tpu_custom_call.1} parent=1 // pred_region
      %106 = dma.done [#allocation9], 4096
    $region41: #{tpu_custom_call.1} parent=1 // pred_fallthru
      _
    // Predicated region
    $region42: #{tpu_custom_call.1} parent=1 // pred_check
      _
    $region43: #{tpu_custom_call.1} parent=1 // pred_check_branch
      %108 = sbr.rel (0) target = $region45
    $region44: #{tpu_custom_call.1} parent=1 // pred_region
      %110 = dma.done [#allocation9], 64
    $region45: #{tpu_custom_call.1} parent=1 // pred_fallthru
      _
    // Predicated region
    $region46: #{tpu_custom_call.1} parent=1 // pred_check
      _
    $region47: #{tpu_custom_call.1} parent=1 // pred_check_branch
      %112 = sbr.rel (0) target = $region49
    $region48: #{tpu_custom_call.1} parent=1 // pred_region
      %114 = dma.done [#allocation12], 4096
    $region49: #{tpu_custom_call.1} parent=1 // pred_fallthru
      _
    // Predicated region
    $region50: #{tpu_custom_call.1} parent=1 // pred_check
      _
    $region51: #{tpu_custom_call.1} parent=1 // pred_check_branch
      %116 = sbr.rel (0) target = $region53
    $region52: #{tpu_custom_call.1} parent=1 // pred_region
      %118 = dma.done [#allocation12], 128
    $region53: #{tpu_custom_call.1} parent=1 // pred_fallthru
      _
    // Predicated region
    $region54: #{tpu_custom_call.1} parent=1 // pred_check
      _
    $region55: #{tpu_custom_call.1} parent=1 // pred_check_branch
      %120 = sbr.rel (0) target = $region57
    $region56: #{tpu_custom_call.1} parent=1 // pred_region
      %122 = dma.done [#allocation15], 1024
    $region57: #{tpu_custom_call.1} parent=1 // pred_fallthru
      _
    %p123 = scmp.eq.s32.totalorder 0, 0
    // Predicated region
    $region58: #{tpu_custom_call.1} parent=1 // pred_check
      %p124 = pneg %p123
    $region59: #{tpu_custom_call.1} parent=1 // pred_check_branch
      %126 = sbr.rel (%p124) target = $region61
    $region60: #{tpu_custom_call.1} parent=1 // pred_region
      %127 = vst [vmem:[#allocation2] sm:$0x3] 0.0
      %128 = vst [vmem:[#allocation3] sm:$0xf] 0.0
      %129 = vst [vmem:[#allocation4] sm:$0x3] 0.0
    $region61: #{tpu_custom_call.1} parent=1 // pred_fallthru
      _
    %v130 = vld [vmem:[#allocation5] sm:$0xf]
    %v131 = vld [vmem:[#allocation5 + $0x4] sm:$0xf]
    %v132 = vld [vmem:[#allocation5 + $0x8] sm:$0xf]
    %v133 = vld [vmem:[#allocation5 + $0xc] sm:$0xf]
    %v134 = vld [vmem:[#allocation5 + $0x10] sm:$0xf]
    %v135 = vld [vmem:[#allocation5 + $0x14] sm:$0xf]
    %v136 = vld [vmem:[#allocation5 + $0x18] sm:$0xf]
    %v137 = vld [vmem:[#allocation5 + $0x1c] sm:$0xf]
    %v138 = vld [vmem:[#allocation5 + $0x20] sm:$0xf]
    %v139 = vld [vmem:[#allocation5 + $0x24] sm:$0xf]
    %v140 = vld [vmem:[#allocation5 + $0x28] sm:$0xf]
    %v141 = vld [vmem:[#allocation5 + $0x2c] sm:$0xf]
    %v142 = vld [vmem:[#allocation5 + $0x30] sm:$0xf]
    %v143 = vld [vmem:[#allocation5 + $0x34] sm:$0xf]
    %v144 = vld [vmem:[#allocation5 + $0x38] sm:$0xf]
    %v145 = vld [vmem:[#allocation5 + $0x3c] sm:$0xf]
    %v146 = vld [vmem:[#allocation5 + $0x40] sm:$0xf]
    %v147 = vld [vmem:[#allocation5 + $0x44] sm:$0xf]
    %v148 = vld [vmem:[#allocation5 + $0x48] sm:$0xf]
    %v149 = vld [vmem:[#allocation5 + $0x4c] sm:$0xf]
    %v150 = vld [vmem:[#allocation5 + $0x50] sm:$0xf]
    %v151 = vld [vmem:[#allocation5 + $0x54] sm:$0xf]
    %v152 = vld [vmem:[#allocation5 + $0x58] sm:$0xf]
    %v153 = vld [vmem:[#allocation5 + $0x5c] sm:$0xf]
    %v154 = vld [vmem:[#allocation5 + $0x60] sm:$0xf]
    %v155 = vld [vmem:[#allocation5 + $0x64] sm:$0xf]
    %v156 = vld [vmem:[#allocation5 + $0x68] sm:$0xf]
    %v157 = vld [vmem:[#allocation5 + $0x6c] sm:$0xf]
    %v158 = vld [vmem:[#allocation5 + $0x70] sm:$0xf]
    %v159 = vld [vmem:[#allocation5 + $0x74] sm:$0xf]
    %v160 = vld [vmem:[#allocation5 + $0x78] sm:$0xf]
    %v161 = vld [vmem:[#allocation5 + $0x7c] sm:$0xf]
    %v162 = vld [vmem:[#allocation8] sm:$0xff]
    %v163 = vld [vmem:[#allocation8 + $0x8] sm:$0xff]
    %v164 = vld [vmem:[#allocation8 + $0x10] sm:$0xff]
    %v165 = vld [vmem:[#allocation8 + $0x18] sm:$0xff]
    %v166 = vld [vmem:[#allocation8 + $0x20] sm:$0xff]
    %v167 = vld [vmem:[#allocation8 + $0x28] sm:$0xff]
    %v168 = vld [vmem:[#allocation8 + $0x30] sm:$0xff]
    %v169 = vld [vmem:[#allocation8 + $0x38] sm:$0xff]
    %v170 = vld [vmem:[#allocation8 + $0x40] sm:$0xff]
    %v171 = vld [vmem:[#allocation8 + $0x48] sm:$0xff]
    %v172 = vld [vmem:[#allocation8 + $0x50] sm:$0xff]
    %v173 = vld [vmem:[#allocation8 + $0x58] sm:$0xff]
    %v174 = vld [vmem:[#allocation8 + $0x60] sm:$0xff]
    %v175 = vld [vmem:[#allocation8 + $0x68] sm:$0xff]
    %v176 = vld [vmem:[#allocation8 + $0x70] sm:$0xff]
    %v177 = vld [vmem:[#allocation8 + $0x78] sm:$0xff]
    %v178 = vld [vmem:[#allocation8 + $0x80] sm:$0xff]
    %v179 = vld [vmem:[#allocation8 + $0x88] sm:$0xff]
    %v180 = vld [vmem:[#allocation8 + $0x90] sm:$0xff]
    %v181 = vld [vmem:[#allocation8 + $0x98] sm:$0xff]
    %v182 = vld [vmem:[#allocation8 + $0xa0] sm:$0xff]
    %v183 = vld [vmem:[#allocation8 + $0xa8] sm:$0xff]
    %v184 = vld [vmem:[#allocation8 + $0xb0] sm:$0xff]
    %v185 = vld [vmem:[#allocation8 + $0xb8] sm:$0xff]
    %v186 = vld [vmem:[#allocation8 + $0xc0] sm:$0xff]
    %v187 = vld [vmem:[#allocation8 + $0xc8] sm:$0xff]
    %v188 = vld [vmem:[#allocation8 + $0xd0] sm:$0xff]
    %v189 = vld [vmem:[#allocation8 + $0xd8] sm:$0xff]
    %v190 = vld [vmem:[#allocation8 + $0xe0] sm:$0xff]
    %v191 = vld [vmem:[#allocation8 + $0xe8] sm:$0xff]
    %v192 = vld [vmem:[#allocation8 + $0xf0] sm:$0xff]
    %v193 = vld [vmem:[#allocation8 + $0xf8] sm:$0xff]
    %v194 = vld [vmem:[#allocation10] sm:$0xf]
    %v196 = vperm.slane %v194, 0
    %v197 = vperm.slane %v194, 1
    %v198 = vperm.slane %v194, 2
    %v199 = vperm.slane %v194, 3
    %v236 = vunpack.c.l.b16 %v130
    %v237 = vunpack.c.l.b16 %v131
    %v238 = vunpack.c.l.b16 %v132
    %v239 = vunpack.c.l.b16 %v133
    %v240 = vunpack.c.l.b16 %v134
    %v241 = vunpack.c.l.b16 %v135
    %v242 = vunpack.c.l.b16 %v136
    %v243 = vunpack.c.l.b16 %v137
    %v244 = vunpack.c.l.b16 %v138
    %v245 = vunpack.c.l.b16 %v139
    %v246 = vunpack.c.l.b16 %v140
    %v247 = vunpack.c.l.b16 %v141
    %v248 = vunpack.c.l.b16 %v142
    %v249 = vunpack.c.l.b16 %v143
    %v250 = vunpack.c.l.b16 %v144
    %v251 = vunpack.c.l.b16 %v145
    %v252 = vunpack.c.l.b16 %v146
    %v253 = vunpack.c.l.b16 %v147
    %v254 = vunpack.c.l.b16 %v148
    %v255 = vunpack.c.l.b16 %v149
    %v256 = vunpack.c.l.b16 %v150
    %v257 = vunpack.c.l.b16 %v151
    %v258 = vunpack.c.l.b16 %v152
    %v259 = vunpack.c.l.b16 %v153
    %v260 = vunpack.c.l.b16 %v154
    %v261 = vunpack.c.l.b16 %v155
    %v262 = vunpack.c.l.b16 %v156
    %v263 = vunpack.c.l.b16 %v157
    %v264 = vunpack.c.l.b16 %v158
    %v265 = vunpack.c.l.b16 %v159
    %v266 = vunpack.c.l.b16 %v160
    %v267 = vunpack.c.l.b16 %v161
    %v268 = vpack.c.b16 %v237, %v236
    %v269 = vpack.c.b16 %v239, %v238
    %v270 = vpack.c.b16 %v241, %v240
    %v271 = vpack.c.b16 %v243, %v242
    %v272 = vpack.c.b16 %v245, %v244
    %v273 = vpack.c.b16 %v247, %v246
    %v274 = vpack.c.b16 %v249, %v248
    %v275 = vpack.c.b16 %v251, %v250
    %v276 = vpack.c.b16 %v253, %v252
    %v277 = vpack.c.b16 %v255, %v254
    %v278 = vpack.c.b16 %v257, %v256
    %v279 = vpack.c.b16 %v259, %v258
    %v280 = vpack.c.b16 %v261, %v260
    %v281 = vpack.c.b16 %v263, %v262
    %v282 = vpack.c.b16 %v265, %v264
    %v283 = vpack.c.b16 %v267, %v266
    %v332 = vunpack.c.l.b16 %v162
    %v333 = vunpack.c.h.b16 %v162
    %v334 = vunpack.c.l.b16 %v163
    %v335 = vunpack.c.h.b16 %v163
    %v336 = vunpack.c.l.b16 %v164
    %v337 = vunpack.c.h.b16 %v164
    %v338 = vunpack.c.l.b16 %v165
    %v339 = vunpack.c.h.b16 %v165
    %v340 = vunpack.c.l.b16 %v166
    %v341 = vunpack.c.h.b16 %v166
    %v342 = vunpack.c.l.b16 %v167
    %v343 = vunpack.c.h.b16 %v167
    %v344 = vunpack.c.l.b16 %v168
    %v345 = vunpack.c.h.b16 %v168
    %v346 = vunpack.c.l.b16 %v169
    %v347 = vunpack.c.h.b16 %v169
    %v348 = vunpack.c.l.b16 %v170
    %v349 = vunpack.c.h.b16 %v170
    %v350 = vunpack.c.l.b16 %v171
    %v351 = vunpack.c.h.b16 %v171
    %v352 = vunpack.c.l.b16 %v172
    %v353 = vunpack.c.h.b16 %v172
    %v354 = vunpack.c.l.b16 %v173
    %v355 = vunpack.c.h.b16 %v173
    %v356 = vunpack.c.l.b16 %v174
    %v357 = vunpack.c.h.b16 %v174
    %v358 = vunpack.c.l.b16 %v175
    %v359 = vunpack.c.h.b16 %v175
    %v360 = vunpack.c.l.b16 %v176
    %v361 = vunpack.c.h.b16 %v176
    %v362 = vunpack.c.l.b16 %v177
    %v363 = vunpack.c.h.b16 %v177
    %v364 = vunpack.c.l.b16 %v178
    %v365 = vunpack.c.h.b16 %v178
    %v366 = vunpack.c.l.b16 %v179
    %v367 = vunpack.c.h.b16 %v179
    %v368 = vunpack.c.l.b16 %v180
    %v369 = vunpack.c.h.b16 %v180
    %v370 = vunpack.c.l.b16 %v181
    %v371 = vunpack.c.h.b16 %v181
    %v372 = vunpack.c.l.b16 %v182
    %v373 = vunpack.c.h.b16 %v182
    %v374 = vunpack.c.l.b16 %v183
    %v375 = vunpack.c.h.b16 %v183
    %v376 = vunpack.c.l.b16 %v184
    %v377 = vunpack.c.h.b16 %v184
    %v378 = vunpack.c.l.b16 %v185
    %v379 = vunpack.c.h.b16 %v185
    %v380 = vunpack.c.l.b16 %v186
    %v381 = vunpack.c.h.b16 %v186
    %v382 = vunpack.c.l.b16 %v187
    %v383 = vunpack.c.h.b16 %v187
    %v384 = vunpack.c.l.b16 %v188
    %v385 = vunpack.c.h.b16 %v188
    %v386 = vunpack.c.l.b16 %v189
    %v387 = vunpack.c.h.b16 %v189
    %v388 = vunpack.c.l.b16 %v190
    %v389 = vunpack.c.h.b16 %v190
    %v390 = vunpack.c.l.b16 %v191
    %v391 = vunpack.c.h.b16 %v191
    %v392 = vunpack.c.l.b16 %v192
    %v393 = vunpack.c.h.b16 %v192
    %v394 = vunpack.c.l.b16 %v193
    %v395 = vunpack.c.h.b16 %v193
    %v396 = vpack.c.b16 %v336, %v332
    %v397 = vpack.c.b16 %v337, %v333
    %v398 = vpack.c.b16 %v338, %v334
    %v399 = vpack.c.b16 %v339, %v335
    %v400 = vpack.c.b16 %v344, %v340
    %v401 = vpack.c.b16 %v345, %v341
    %v402 = vpack.c.b16 %v346, %v342
    %v403 = vpack.c.b16 %v347, %v343
    %v404 = vpack.c.b16 %v352, %v348
    %v405 = vpack.c.b16 %v353, %v349
    %v406 = vpack.c.b16 %v354, %v350
    %v407 = vpack.c.b16 %v355, %v351
    %v408 = vpack.c.b16 %v360, %v356
    %v409 = vpack.c.b16 %v361, %v357
    %v410 = vpack.c.b16 %v362, %v358
    %v411 = vpack.c.b16 %v363, %v359
    %v412 = vpack.c.b16 %v368, %v364
    %v413 = vpack.c.b16 %v369, %v365
    %v414 = vpack.c.b16 %v370, %v366
    %v415 = vpack.c.b16 %v371, %v367
    %v416 = vpack.c.b16 %v376, %v372
    %v417 = vpack.c.b16 %v377, %v373
    %v418 = vpack.c.b16 %v378, %v374
    %v419 = vpack.c.b16 %v379, %v375
    %v420 = vpack.c.b16 %v384, %v380
    %v421 = vpack.c.b16 %v385, %v381
    %v422 = vpack.c.b16 %v386, %v382
    %v423 = vpack.c.b16 %v387, %v383
    %v424 = vpack.c.b16 %v392, %v388
    %v425 = vpack.c.b16 %v393, %v389
    %v426 = vpack.c.b16 %v394, %v390
    %v427 = vpack.c.b16 %v395, %v391
    %460 = vmatpush.bf16.msra.mxu0 %v424
    %461 = vmatpush.bf16.msra.mxu0 %v420
    %462 = vmatpush.bf16.msra.mxu0 %v416
    %463 = vmatpush.bf16.msra.mxu0 %v412
    %464 = vmatpush.bf16.msra.mxu0 %v408
    %465 = vmatpush.bf16.msra.mxu0 %v404
    %466 = vmatpush.bf16.msra.mxu0 %v400
    %467 = vmatpush.bf16.msra.mxu0 %v396
    %468 = vmatmul.bf16.gmra.mxu0 %v268
    %v469 = vpop.f32.mrf.mxu0
    %v470 = vadd.f32 %v196, %v469
    %v471 = vpop.f32.mrf.mxu0
    %v472 = vadd.f32 %v196, %v471
    %473 = vmatmul.bf16.gmra.mxu0 %v269
    %v474 = vpop.f32.mrf.mxu0
    %v475 = vadd.f32 %v196, %v474
    %v476 = vpop.f32.mrf.mxu0
    %v477 = vadd.f32 %v196, %v476
    %478 = vmatmul.bf16.gmra.mxu0 %v270
    %v479 = vpop.f32.mrf.mxu0
    %v480 = vadd.f32 %v196, %v479
    %v481 = vpop.f32.mrf.mxu0
    %v482 = vadd.f32 %v196, %v481
    %483 = vmatmul.bf16.gmra.mxu0 %v271
    %v484 = vpop.f32.mrf.mxu0
    %v485 = vadd.f32 %v196, %v484
    %v486 = vpop.f32.mrf.mxu0
    %v487 = vadd.f32 %v196, %v486
    %488 = vmatmul.bf16.gmra.mxu0 %v272
    %v489 = vpop.f32.mrf.mxu0
    %v490 = vadd.f32 %v196, %v489
    %v491 = vpop.f32.mrf.mxu0
    %v492 = vadd.f32 %v196, %v491
    %493 = vmatmul.bf16.gmra.mxu0 %v273
    %v494 = vpop.f32.mrf.mxu0
    %v495 = vadd.f32 %v196, %v494
    %v496 = vpop.f32.mrf.mxu0
    %v497 = vadd.f32 %v196, %v496
    %498 = vmatmul.bf16.gmra.mxu0 %v274
    %v499 = vpop.f32.mrf.mxu0
    %v500 = vadd.f32 %v196, %v499
    %v501 = vpop.f32.mrf.mxu0
    %v502 = vadd.f32 %v196, %v501
    %503 = vmatmul.bf16.gmra.mxu0 %v275
    %v504 = vpop.f32.mrf.mxu0
    %v505 = vadd.f32 %v196, %v504
    %v506 = vpop.f32.mrf.mxu0
    %v507 = vadd.f32 %v196, %v506
    %508 = vmatmul.bf16.gmra.mxu0 %v276
    %v509 = vpop.f32.mrf.mxu0
    %v510 = vadd.f32 %v196, %v509
    %v511 = vpop.f32.mrf.mxu0
    %v512 = vadd.f32 %v196, %v511
    %513 = vmatmul.bf16.gmra.mxu0 %v277
    %v514 = vpop.f32.mrf.mxu0
    %v515 = vadd.f32 %v196, %v514
    %v516 = vpop.f32.mrf.mxu0
    %v517 = vadd.f32 %v196, %v516
    %518 = vmatmul.bf16.gmra.mxu0 %v278
    %v519 = vpop.f32.mrf.mxu0
    %v520 = vadd.f32 %v196, %v519
    %v521 = vpop.f32.mrf.mxu0
    %v522 = vadd.f32 %v196, %v521
    %523 = vmatmul.bf16.gmra.mxu0 %v279
    %v524 = vpop.f32.mrf.mxu0
    %v525 = vadd.f32 %v196, %v524
    %v526 = vpop.f32.mrf.mxu0
    %v527 = vadd.f32 %v196, %v526
    %528 = vmatmul.bf16.gmra.mxu0 %v280
    %v529 = vpop.f32.mrf.mxu0
    %v530 = vadd.f32 %v196, %v529
    %v531 = vpop.f32.mrf.mxu0
    %v532 = vadd.f32 %v196, %v531
    %533 = vmatmul.bf16.gmra.mxu0 %v281
    %v534 = vpop.f32.mrf.mxu0
    %v535 = vadd.f32 %v196, %v534
    %v536 = vpop.f32.mrf.mxu0
    %v537 = vadd.f32 %v196, %v536
    %538 = vmatmul.bf16.gmra.mxu0 %v282
    %v539 = vpop.f32.mrf.mxu0
    %v540 = vadd.f32 %v196, %v539
    %v541 = vpop.f32.mrf.mxu0
    %v542 = vadd.f32 %v196, %v541
    %543 = vmatmul.bf16.gmra.mxu0 %v283
    %v544 = vpop.f32.mrf.mxu0
    %v545 = vadd.f32 %v196, %v544
    %v546 = vpop.f32.mrf.mxu0
    %v547 = vadd.f32 %v196, %v546
    %548 = vdwg.mxu0
    %549 = vmatpush.bf16.msra.mxu0 %v425
    %550 = vmatpush.bf16.msra.mxu0 %v421
    %551 = vmatpush.bf16.msra.mxu0 %v417
    %552 = vmatpush.bf16.msra.mxu0 %v413
    %553 = vmatpush.bf16.msra.mxu0 %v409
    %554 = vmatpush.bf16.msra.mxu0 %v405
    %555 = vmatpush.bf16.msra.mxu0 %v401
    %556 = vmatpush.bf16.msra.mxu0 %v397
    %557 = vmatmul.bf16.gmra.mxu0 %v268
    %v558 = vpop.f32.mrf.mxu0
    %v559 = vadd.f32 %v197, %v558
    %v560 = vpop.f32.mrf.mxu0
    %v561 = vadd.f32 %v197, %v560
    %562 = vmatmul.bf16.gmra.mxu0 %v269
    %v563 = vpop.f32.mrf.mxu0
    %v564 = vadd.f32 %v197, %v563
    %v565 = vpop.f32.mrf.mxu0
    %v566 = vadd.f32 %v197, %v565
    %567 = vmatmul.bf16.gmra.mxu0 %v270
    %v568 = vpop.f32.mrf.mxu0
    %v569 = vadd.f32 %v197, %v568
    %v570 = vpop.f32.mrf.mxu0
    %v571 = vadd.f32 %v197, %v570
    %572 = vmatmul.bf16.gmra.mxu0 %v271
    %v573 = vpop.f32.mrf.mxu0
    %v574 = vadd.f32 %v197, %v573
    %v575 = vpop.f32.mrf.mxu0
    %v576 = vadd.f32 %v197, %v575
    %577 = vmatmul.bf16.gmra.mxu0 %v272
    %v578 = vpop.f32.mrf.mxu0
    %v579 = vadd.f32 %v197, %v578
    %v580 = vpop.f32.mrf.mxu0
    %v581 = vadd.f32 %v197, %v580
    %582 = vmatmul.bf16.gmra.mxu0 %v273
    %v583 = vpop.f32.mrf.mxu0
    %v584 = vadd.f32 %v197, %v583
    %v585 = vpop.f32.mrf.mxu0
    %v586 = vadd.f32 %v197, %v585
    %587 = vmatmul.bf16.gmra.mxu0 %v274
    %v588 = vpop.f32.mrf.mxu0
    %v589 = vadd.f32 %v197, %v588
    %v590 = vpop.f32.mrf.mxu0
    %v591 = vadd.f32 %v197, %v590
    %592 = vmatmul.bf16.gmra.mxu0 %v275
    %v593 = vpop.f32.mrf.mxu0
    %v594 = vadd.f32 %v197, %v593
    %v595 = vpop.f32.mrf.mxu0
    %v596 = vadd.f32 %v197, %v595
    %597 = vmatmul.bf16.gmra.mxu0 %v276
    %v598 = vpop.f32.mrf.mxu0
    %v599 = vadd.f32 %v197, %v598
    %v600 = vpop.f32.mrf.mxu0
    %v601 = vadd.f32 %v197, %v600
    %602 = vmatmul.bf16.gmra.mxu0 %v277
    %v603 = vpop.f32.mrf.mxu0
    %v604 = vadd.f32 %v197, %v603
    %v605 = vpop.f32.mrf.mxu0
    %v606 = vadd.f32 %v197, %v605
    %607 = vmatmul.bf16.gmra.mxu0 %v278
    %v608 = vpop.f32.mrf.mxu0
    %v609 = vadd.f32 %v197, %v608
    %v610 = vpop.f32.mrf.mxu0
    %v611 = vadd.f32 %v197, %v610
    %612 = vmatmul.bf16.gmra.mxu0 %v279
    %v613 = vpop.f32.mrf.mxu0
    %v614 = vadd.f32 %v197, %v613
    %v615 = vpop.f32.mrf.mxu0
    %v616 = vadd.f32 %v197, %v615
    %617 = vmatmul.bf16.gmra.mxu0 %v280
    %v618 = vpop.f32.mrf.mxu0
    %v619 = vadd.f32 %v197, %v618
    %v620 = vpop.f32.mrf.mxu0
    %v621 = vadd.f32 %v197, %v620
    %622 = vmatmul.bf16.gmra.mxu0 %v281
    %v623 = vpop.f32.mrf.mxu0
    %v624 = vadd.f32 %v197, %v623
    %v625 = vpop.f32.mrf.mxu0
    %v626 = vadd.f32 %v197, %v625
    %627 = vmatmul.bf16.gmra.mxu0 %v282
    %v628 = vpop.f32.mrf.mxu0
    %v629 = vadd.f32 %v197, %v628
    %v630 = vpop.f32.mrf.mxu0
    %v631 = vadd.f32 %v197, %v630
    %632 = vmatmul.bf16.gmra.mxu0 %v283
    %v633 = vpop.f32.mrf.mxu0
    %v634 = vadd.f32 %v197, %v633
    %v635 = vpop.f32.mrf.mxu0
    %v636 = vadd.f32 %v197, %v635
    %637 = vdwg.mxu0
    %638 = vmatpush.bf16.msra.mxu0 %v426
    %639 = vmatpush.bf16.msra.mxu0 %v422
    %640 = vmatpush.bf16.msra.mxu0 %v418
    %641 = vmatpush.bf16.msra.mxu0 %v414
    %642 = vmatpush.bf16.msra.mxu0 %v410
    %643 = vmatpush.bf16.msra.mxu0 %v406
    %644 = vmatpush.bf16.msra.mxu0 %v402
    %645 = vmatpush.bf16.msra.mxu0 %v398
    %646 = vmatmul.bf16.gmra.mxu0 %v268
    %v647 = vpop.f32.mrf.mxu0
    %v648 = vadd.f32 %v198, %v647
    %v649 = vpop.f32.mrf.mxu0
    %v650 = vadd.f32 %v198, %v649
    %651 = vmatmul.bf16.gmra.mxu0 %v269
    %v652 = vpop.f32.mrf.mxu0
    %v653 = vadd.f32 %v198, %v652
    %v654 = vpop.f32.mrf.mxu0
    %v655 = vadd.f32 %v198, %v654
    %656 = vmatmul.bf16.gmra.mxu0 %v270
    %v657 = vpop.f32.mrf.mxu0
    %v658 = vadd.f32 %v198, %v657
    %v659 = vpop.f32.mrf.mxu0
    %v660 = vadd.f32 %v198, %v659
    %661 = vmatmul.bf16.gmra.mxu0 %v271
    %v662 = vpop.f32.mrf.mxu0
    %v663 = vadd.f32 %v198, %v662
    %v664 = vpop.f32.mrf.mxu0
    %v665 = vadd.f32 %v198, %v664
    %666 = vmatmul.bf16.gmra.mxu0 %v272
    %v667 = vpop.f32.mrf.mxu0
    %v668 = vadd.f32 %v198, %v667
    %v669 = vpop.f32.mrf.mxu0
    %v670 = vadd.f32 %v198, %v669
    %671 = vmatmul.bf16.gmra.mxu0 %v273
    %v672 = vpop.f32.mrf.mxu0
    %v673 = vadd.f32 %v198, %v672
    %v674 = vpop.f32.mrf.mxu0
    %v675 = vadd.f32 %v198, %v674
    %676 = vmatmul.bf16.gmra.mxu0 %v274
    %v677 = vpop.f32.mrf.mxu0
    %v678 = vadd.f32 %v198, %v677
    %v679 = vpop.f32.mrf.mxu0
    %v680 = vadd.f32 %v198, %v679
    %681 = vmatmul.bf16.gmra.mxu0 %v275
    %v682 = vpop.f32.mrf.mxu0
    %v683 = vadd.f32 %v198, %v682
    %v684 = vpop.f32.mrf.mxu0
    %v685 = vadd.f32 %v198, %v684
    %686 = vmatmul.bf16.gmra.mxu0 %v276
    %v687 = vpop.f32.mrf.mxu0
    %v688 = vadd.f32 %v198, %v687
    %v689 = vpop.f32.mrf.mxu0
    %v690 = vadd.f32 %v198, %v689
    %691 = vmatmul.bf16.gmra.mxu0 %v277
    %v692 = vpop.f32.mrf.mxu0
    %v693 = vadd.f32 %v198, %v692
    %v694 = vpop.f32.mrf.mxu0
    %v695 = vadd.f32 %v198, %v694
    %696 = vmatmul.bf16.gmra.mxu0 %v278
    %v697 = vpop.f32.mrf.mxu0
    %v698 = vadd.f32 %v198, %v697
    %v699 = vpop.f32.mrf.mxu0
    %v700 = vadd.f32 %v198, %v699
    %701 = vmatmul.bf16.gmra.mxu0 %v279
    %v702 = vpop.f32.mrf.mxu0
    %v703 = vadd.f32 %v198, %v702
    %v704 = vpop.f32.mrf.mxu0
    %v705 = vadd.f32 %v198, %v704
    %706 = vmatmul.bf16.gmra.mxu0 %v280
    %v707 = vpop.f32.mrf.mxu0
    %v708 = vadd.f32 %v198, %v707
    %v709 = vpop.f32.mrf.mxu0
    %v710 = vadd.f32 %v198, %v709
    %711 = vmatmul.bf16.gmra.mxu0 %v281
    %v712 = vpop.f32.mrf.mxu0
    %v713 = vadd.f32 %v198, %v712
    %v714 = vpop.f32.mrf.mxu0
    %v715 = vadd.f32 %v198, %v714
    %716 = vmatmul.bf16.gmra.mxu0 %v282
    %v717 = vpop.f32.mrf.mxu0
    %v718 = vadd.f32 %v198, %v717
    %v719 = vpop.f32.mrf.mxu0
    %v720 = vadd.f32 %v198, %v719
    %721 = vmatmul.bf16.gmra.mxu0 %v283
    %v722 = vpop.f32.mrf.mxu0
    %v723 = vadd.f32 %v198, %v722
    %v724 = vpop.f32.mrf.mxu0
    %v725 = vadd.f32 %v198, %v724
    %726 = vdwg.mxu0
    %727 = vmatpush.bf16.msra.mxu0 %v427
    %728 = vmatpush.bf16.msra.mxu0 %v423
    %729 = vmatpush.bf16.msra.mxu0 %v419
    %730 = vmatpush.bf16.msra.mxu0 %v415
    %731 = vmatpush.bf16.msra.mxu0 %v411
    %732 = vmatpush.bf16.msra.mxu0 %v407
    %733 = vmatpush.bf16.msra.mxu0 %v403
    %734 = vmatpush.bf16.msra.mxu0 %v399
    %735 = vmatmul.bf16.gmra.mxu0 %v268
    %v736 = vpop.f32.mrf.mxu0
    %v737 = vadd.f32 %v199, %v736
    %v738 = vpop.f32.mrf.mxu0
    %v739 = vadd.f32 %v199, %v738
    %740 = vmatmul.bf16.gmra.mxu0 %v269
    %v741 = vpop.f32.mrf.mxu0
    %v742 = vadd.f32 %v199, %v741
    %v743 = vpop.f32.mrf.mxu0
    %v744 = vadd.f32 %v199, %v743
    %745 = vmatmul.bf16.gmra.mxu0 %v270
    %v746 = vpop.f32.mrf.mxu0
    %v747 = vadd.f32 %v199, %v746
    %v748 = vpop.f32.mrf.mxu0
    %v749 = vadd.f32 %v199, %v748
    %750 = vmatmul.bf16.gmra.mxu0 %v271
    %v751 = vpop.f32.mrf.mxu0
    %v752 = vadd.f32 %v199, %v751
    %v753 = vpop.f32.mrf.mxu0
    %v754 = vadd.f32 %v199, %v753
    %755 = vmatmul.bf16.gmra.mxu0 %v272
    %v756 = vpop.f32.mrf.mxu0
    %v757 = vadd.f32 %v199, %v756
    %v758 = vpop.f32.mrf.mxu0
    %v759 = vadd.f32 %v199, %v758
    %760 = vmatmul.bf16.gmra.mxu0 %v273
    %v761 = vpop.f32.mrf.mxu0
    %v762 = vadd.f32 %v199, %v761
    %v763 = vpop.f32.mrf.mxu0
    %v764 = vadd.f32 %v199, %v763
    %765 = vmatmul.bf16.gmra.mxu0 %v274
    %v766 = vpop.f32.mrf.mxu0
    %v767 = vadd.f32 %v199, %v766
    %v768 = vpop.f32.mrf.mxu0
    %v769 = vadd.f32 %v199, %v768
    %770 = vmatmul.bf16.gmra.mxu0 %v275
    %v771 = vpop.f32.mrf.mxu0
    %v772 = vadd.f32 %v199, %v771
    %v773 = vpop.f32.mrf.mxu0
    %v774 = vadd.f32 %v199, %v773
    %775 = vmatmul.bf16.gmra.mxu0 %v276
    %v776 = vpop.f32.mrf.mxu0
    %v777 = vadd.f32 %v199, %v776
    %v778 = vpop.f32.mrf.mxu0
    %v779 = vadd.f32 %v199, %v778
    %780 = vmatmul.bf16.gmra.mxu0 %v277
    %v781 = vpop.f32.mrf.mxu0
    %v782 = vadd.f32 %v199, %v781
    %v783 = vpop.f32.mrf.mxu0
    %v784 = vadd.f32 %v199, %v783
    %785 = vmatmul.bf16.gmra.mxu0 %v278
    %v786 = vpop.f32.mrf.mxu0
    %v787 = vadd.f32 %v199, %v786
    %v788 = vpop.f32.mrf.mxu0
    %v789 = vadd.f32 %v199, %v788
    %790 = vmatmul.bf16.gmra.mxu0 %v279
    %v791 = vpop.f32.mrf.mxu0
    %v792 = vadd.f32 %v199, %v791
    %v793 = vpop.f32.mrf.mxu0
    %v794 = vadd.f32 %v199, %v793
    %795 = vmatmul.bf16.gmra.mxu0 %v280
    %v796 = vpop.f32.mrf.mxu0
    %v797 = vadd.f32 %v199, %v796
    %v798 = vpop.f32.mrf.mxu0
    %v799 = vadd.f32 %v199, %v798
    %800 = vmatmul.bf16.gmra.mxu0 %v281
    %v801 = vpop.f32.mrf.mxu0
    %v802 = vadd.f32 %v199, %v801
    %v803 = vpop.f32.mrf.mxu0
    %v804 = vadd.f32 %v199, %v803
    %805 = vmatmul.bf16.gmra.mxu0 %v282
    %v806 = vpop.f32.mrf.mxu0
    %v807 = vadd.f32 %v199, %v806
    %v808 = vpop.f32.mrf.mxu0
    %v809 = vadd.f32 %v199, %v808
    %810 = vmatmul.bf16.gmra.mxu0 %v283
    %v811 = vpop.f32.mrf.mxu0
    %v812 = vadd.f32 %v199, %v811
    %v813 = vpop.f32.mrf.mxu0
    %v814 = vadd.f32 %v199, %v813
    %815 = vdwg.mxu0
    %v816 = vmax.f32 %v470, 0.0
    %v817 = vmax.f32 %v559, 0.0
    %v818 = vmax.f32 %v648, 0.0
    %v819 = vmax.f32 %v737, 0.0
    %v820 = vmax.f32 %v472, 0.0
    %v821 = vmax.f32 %v561, 0.0
    %v822 = vmax.f32 %v650, 0.0
    %v823 = vmax.f32 %v739, 0.0
    %v824 = vmax.f32 %v475, 0.0
    %v825 = vmax.f32 %v564, 0.0
    %v826 = vmax.f32 %v653, 0.0
    %v827 = vmax.f32 %v742, 0.0
    %v828 = vmax.f32 %v477, 0.0
    %v829 = vmax.f32 %v566, 0.0
    %v830 = vmax.f32 %v655, 0.0
    %v831 = vmax.f32 %v744, 0.0
    %v832 = vmax.f32 %v480, 0.0
    %v833 = vmax.f32 %v569, 0.0
    %v834 = vmax.f32 %v658, 0.0
    %v835 = vmax.f32 %v747, 0.0
    %v836 = vmax.f32 %v482, 0.0
    %v837 = vmax.f32 %v571, 0.0
    %v838 = vmax.f32 %v660, 0.0
    %v839 = vmax.f32 %v749, 0.0
    %v840 = vmax.f32 %v485, 0.0
    %v841 = vmax.f32 %v574, 0.0
    %v842 = vmax.f32 %v663, 0.0
    %v843 = vmax.f32 %v752, 0.0
    %v844 = vmax.f32 %v487, 0.0
    %v845 = vmax.f32 %v576, 0.0
    %v846 = vmax.f32 %v665, 0.0
    %v847 = vmax.f32 %v754, 0.0
    %v848 = vmax.f32 %v490, 0.0
    %v849 = vmax.f32 %v579, 0.0
    %v850 = vmax.f32 %v668, 0.0
    %v851 = vmax.f32 %v757, 0.0
    %v852 = vmax.f32 %v492, 0.0
    %v853 = vmax.f32 %v581, 0.0
    %v854 = vmax.f32 %v670, 0.0
    %v855 = vmax.f32 %v759, 0.0
    %v856 = vmax.f32 %v495, 0.0
    %v857 = vmax.f32 %v584, 0.0
    %v858 = vmax.f32 %v673, 0.0
    %v859 = vmax.f32 %v762, 0.0
    %v860 = vmax.f32 %v497, 0.0
    %v861 = vmax.f32 %v586, 0.0
    %v862 = vmax.f32 %v675, 0.0
    %v863 = vmax.f32 %v764, 0.0
    %v864 = vmax.f32 %v500, 0.0
    %v865 = vmax.f32 %v589, 0.0
    %v866 = vmax.f32 %v678, 0.0
    %v867 = vmax.f32 %v767, 0.0
    %v868 = vmax.f32 %v502, 0.0
    %v869 = vmax.f32 %v591, 0.0
    %v870 = vmax.f32 %v680, 0.0
    %v871 = vmax.f32 %v769, 0.0
    %v872 = vmax.f32 %v505, 0.0
    %v873 = vmax.f32 %v594, 0.0
    %v874 = vmax.f32 %v683, 0.0
    %v875 = vmax.f32 %v772, 0.0
    %v876 = vmax.f32 %v507, 0.0
    %v877 = vmax.f32 %v596, 0.0
    %v878 = vmax.f32 %v685, 0.0
    %v879 = vmax.f32 %v774, 0.0
    %v880 = vmax.f32 %v510, 0.0
    %v881 = vmax.f32 %v599, 0.0
    %v882 = vmax.f32 %v688, 0.0
    %v883 = vmax.f32 %v777, 0.0
    %v884 = vmax.f32 %v512, 0.0
    %v885 = vmax.f32 %v601, 0.0
    %v886 = vmax.f32 %v690, 0.0
    %v887 = vmax.f32 %v779, 0.0
    %v888 = vmax.f32 %v515, 0.0
    %v889 = vmax.f32 %v604, 0.0
    %v890 = vmax.f32 %v693, 0.0
    %v891 = vmax.f32 %v782, 0.0
    %v892 = vmax.f32 %v517, 0.0
    %v893 = vmax.f32 %v606, 0.0
    %v894 = vmax.f32 %v695, 0.0
    %v895 = vmax.f32 %v784, 0.0
    %v896 = vmax.f32 %v520, 0.0
    %v897 = vmax.f32 %v609, 0.0
    %v898 = vmax.f32 %v698, 0.0
    %v899 = vmax.f32 %v787, 0.0
    %v900 = vmax.f32 %v522, 0.0
    %v901 = vmax.f32 %v611, 0.0
    %v902 = vmax.f32 %v700, 0.0
    %v903 = vmax.f32 %v789, 0.0
    %v904 = vmax.f32 %v525, 0.0
    %v905 = vmax.f32 %v614, 0.0
    %v906 = vmax.f32 %v703, 0.0
    %v907 = vmax.f32 %v792, 0.0
    %v908 = vmax.f32 %v527, 0.0
    %v909 = vmax.f32 %v616, 0.0
    %v910 = vmax.f32 %v705, 0.0
    %v911 = vmax.f32 %v794, 0.0
    %v912 = vmax.f32 %v530, 0.0
    %v913 = vmax.f32 %v619, 0.0
    %v914 = vmax.f32 %v708, 0.0
    %v915 = vmax.f32 %v797, 0.0
    %v916 = vmax.f32 %v532, 0.0
    %v917 = vmax.f32 %v621, 0.0
    %v918 = vmax.f32 %v710, 0.0
    %v919 = vmax.f32 %v799, 0.0
    %v920 = vmax.f32 %v535, 0.0
    %v921 = vmax.f32 %v624, 0.0
    %v922 = vmax.f32 %v713, 0.0
    %v923 = vmax.f32 %v802, 0.0
    %v924 = vmax.f32 %v537, 0.0
    %v925 = vmax.f32 %v626, 0.0
    %v926 = vmax.f32 %v715, 0.0
    %v927 = vmax.f32 %v804, 0.0
    %v928 = vmax.f32 %v540, 0.0
    %v929 = vmax.f32 %v629, 0.0
    %v930 = vmax.f32 %v718, 0.0
    %v931 = vmax.f32 %v807, 0.0
    %v932 = vmax.f32 %v542, 0.0
    %v933 = vmax.f32 %v631, 0.0
    %v934 = vmax.f32 %v720, 0.0
    %v935 = vmax.f32 %v809, 0.0
    %v936 = vmax.f32 %v545, 0.0
    %v937 = vmax.f32 %v634, 0.0
    %v938 = vmax.f32 %v723, 0.0
    %v939 = vmax.f32 %v812, 0.0
    %v940 = vmax.f32 %v547, 0.0
    %v941 = vmax.f32 %v636, 0.0
    %v942 = vmax.f32 %v725, 0.0
    %v943 = vmax.f32 %v814, 0.0
    %v944 = vpack.c.bf16 %v816, %v816
    %v945 = vpack.c.bf16 %v820, %v820
    %v946 = vpack.c.bf16 %v824, %v824
    %v947 = vpack.c.bf16 %v828, %v828
    %v948 = vpack.c.bf16 %v832, %v832
    %v949 = vpack.c.bf16 %v836, %v836
    %v950 = vpack.c.bf16 %v840, %v840
    %v951 = vpack.c.bf16 %v844, %v844
    %v952 = vpack.c.bf16 %v848, %v848
    %v953 = vpack.c.bf16 %v852, %v852
    %v954 = vpack.c.bf16 %v856, %v856
    %v955 = vpack.c.bf16 %v860, %v860
    %v956 = vpack.c.bf16 %v864, %v864
    %v957 = vpack.c.bf16 %v868, %v868
    %v958 = vpack.c.bf16 %v872, %v872
    %v959 = vpack.c.bf16 %v876, %v876
    %v960 = vpack.c.bf16 %v880, %v880
    %v961 = vpack.c.bf16 %v884, %v884
    %v962 = vpack.c.bf16 %v888, %v888
    %v963 = vpack.c.bf16 %v892, %v892
    %v964 = vpack.c.bf16 %v896, %v896
    %v965 = vpack.c.bf16 %v900, %v900
    %v966 = vpack.c.bf16 %v904, %v904
    %v967 = vpack.c.bf16 %v908, %v908
    %v968 = vpack.c.bf16 %v912, %v912
    %v969 = vpack.c.bf16 %v916, %v916
    %v970 = vpack.c.bf16 %v920, %v920
    %v971 = vpack.c.bf16 %v924, %v924
    %v972 = vpack.c.bf16 %v928, %v928
    %v973 = vpack.c.bf16 %v932, %v932
    %v974 = vpack.c.bf16 %v936, %v936
    %v975 = vpack.c.bf16 %v940, %v940
    %976 = vst [vmem:[#allocation16] sm:$0xf] %v944
    %977 = vst [vmem:[#allocation16 + $0x4] sm:$0xf] %v945
    %978 = vst [vmem:[#allocation16 + $0x8] sm:$0xf] %v946
    %979 = vst [vmem:[#allocation16 + $0xc] sm:$0xf] %v947
    %980 = vst [vmem:[#allocation16 + $0x10] sm:$0xf] %v948
    %981 = vst [vmem:[#allocation16 + $0x14] sm:$0xf] %v949
    %982 = vst [vmem:[#allocation16 + $0x18] sm:$0xf] %v950
    %983 = vst [vmem:[#allocation16 + $0x1c] sm:$0xf] %v951
    %984 = vst [vmem:[#allocation16 + $0x20] sm:$0xf] %v952
    %985 = vst [vmem:[#allocation16 + $0x24] sm:$0xf] %v953
    %986 = vst [vmem:[#allocation16 + $0x28] sm:$0xf] %v954
    %987 = vst [vmem:[#allocation16 + $0x2c] sm:$0xf] %v955
    %988 = vst [vmem:[#allocation16 + $0x30] sm:$0xf] %v956
    %989 = vst [vmem:[#allocation16 + $0x34] sm:$0xf] %v957
    %990 = vst [vmem:[#allocation16 + $0x38] sm:$0xf] %v958
    %991 = vst [vmem:[#allocation16 + $0x3c] sm:$0xf] %v959
    %992 = vst [vmem:[#allocation16 + $0x40] sm:$0xf] %v960
    %993 = vst [vmem:[#allocation16 + $0x44] sm:$0xf] %v961
    %994 = vst [vmem:[#allocation16 + $0x48] sm:$0xf] %v962
    %995 = vst [vmem:[#allocation16 + $0x4c] sm:$0xf] %v963
    %996 = vst [vmem:[#allocation16 + $0x50] sm:$0xf] %v964
    %997 = vst [vmem:[#allocation16 + $0x54] sm:$0xf] %v965
    %998 = vst [vmem:[#allocation16 + $0x58] sm:$0xf] %v966
    %999 = vst [vmem:[#allocation16 + $0x5c] sm:$0xf] %v967
    %1000 = vst [vmem:[#allocation16 + $0x60] sm:$0xf] %v968
    %1001 = vst [vmem:[#allocation16 + $0x64] sm:$0xf] %v969
    %1002 = vst [vmem:[#allocation16 + $0x68] sm:$0xf] %v970
    %1003 = vst [vmem:[#allocation16 + $0x6c] sm:$0xf] %v971
    %1004 = vst [vmem:[#allocation16 + $0x70] sm:$0xf] %v972
    %1005 = vst [vmem:[#allocation16 + $0x74] sm:$0xf] %v973
    %1006 = vst [vmem:[#allocation16 + $0x78] sm:$0xf] %v974
    %1007 = vst [vmem:[#allocation16 + $0x7c] sm:$0xf] %v975
    %s1008 = smul.u32 0, 128
    %v1009 = vlaneseq
    %v1010 = vshrl.u32 %v1009, 7
    %v1011 = vadd.s32 %v1010, 8
    %v1012 = vadd.s32 %v1010, 16
    %v1013 = vadd.s32 %v1010, 24
    %v1014 = vadd.s32 %v1010, 32
    %v1015 = vadd.s32 %v1010, 40
    %v1016 = vadd.s32 %v1010, 48
    %v1017 = vadd.s32 %v1010, 56
    %v1018 = vadd.s32 %v1010, 64
    %v1019 = vadd.s32 %v1010, 72
    %v1020 = vadd.s32 %v1010, 80
    %v1021 = vadd.s32 %v1010, 88
    %v1022 = vadd.s32 %v1010, 96
    %v1023 = vadd.s32 %v1010, 104
    %v1024 = vadd.s32 %v1010, 112
    %v1025 = vadd.s32 %v1010, 120
    %v1026 = vstv %s1008
    %v1027 = vadd.s32 %v1026, %v1010
    %v1028 = vadd.s32 %v1026, %v1011
    %v1029 = vadd.s32 %v1026, %v1012
    %v1030 = vadd.s32 %v1026, %v1013
    %v1031 = vadd.s32 %v1026, %v1014
    %v1032 = vadd.s32 %v1026, %v1015
    %v1033 = vadd.s32 %v1026, %v1016
    %v1034 = vadd.s32 %v1026, %v1017
    %v1035 = vadd.s32 %v1026, %v1018
    %v1036 = vadd.s32 %v1026, %v1019
    %v1037 = vadd.s32 %v1026, %v1020
    %v1038 = vadd.s32 %v1026, %v1021
    %v1039 = vadd.s32 %v1026, %v1022
    %v1040 = vadd.s32 %v1026, %v1023
    %v1041 = vadd.s32 %v1026, %v1024
    %v1042 = vadd.s32 %v1026, %v1025
    %vm1043 = vcmp.lt.s32.totalorder %v1027, 32
    %vm1044 = vcmp.lt.s32.totalorder %v1028, 32
    %vm1045 = vcmp.lt.s32.totalorder %v1029, 32
    %vm1046 = vcmp.lt.s32.totalorder %v1030, 32
    %vm1047 = vcmp.lt.s32.totalorder %v1031, 32
    %vm1048 = vcmp.lt.s32.totalorder %v1032, 32
    %vm1049 = vcmp.lt.s32.totalorder %v1033, 32
    %vm1050 = vcmp.lt.s32.totalorder %v1034, 32
    %vm1051 = vcmp.lt.s32.totalorder %v1035, 32
    %vm1052 = vcmp.lt.s32.totalorder %v1036, 32
    %vm1053 = vcmp.lt.s32.totalorder %v1037, 32
    %vm1054 = vcmp.lt.s32.totalorder %v1038, 32
    %vm1055 = vcmp.lt.s32.totalorder %v1039, 32
    %vm1056 = vcmp.lt.s32.totalorder %v1040, 32
    %vm1057 = vcmp.lt.s32.totalorder %v1041, 32
    %vm1058 = vcmp.lt.s32.totalorder %v1042, 32
    %v1059 = vsel %vm1043, 1, 0
    %v1060 = vsel %vm1044, 1, 0
    %v1061 = vsel %vm1045, 1, 0
    %v1062 = vsel %vm1046, 1, 0
    %v1063 = vsel %vm1047, 1, 0
    %v1064 = vsel %vm1048, 1, 0
    %v1065 = vsel %vm1049, 1, 0
    %v1066 = vsel %vm1050, 1, 0
    %v1067 = vsel %vm1051, 1, 0
    %v1068 = vsel %vm1052, 1, 0
    %v1069 = vsel %vm1053, 1, 0
    %v1070 = vsel %vm1054, 1, 0
    %v1071 = vsel %vm1055, 1, 0
    %v1072 = vsel %vm1056, 1, 0
    %v1073 = vsel %vm1057, 1, 0
    %v1074 = vsel %vm1058, 1, 0
    %v1075 = vcvt.s32.f32 %v1059
    %v1076 = vcvt.s32.f32 %v1060
    %v1077 = vcvt.s32.f32 %v1061
    %v1078 = vcvt.s32.f32 %v1062
    %v1079 = vcvt.s32.f32 %v1063
    %v1080 = vcvt.s32.f32 %v1064
    %v1081 = vcvt.s32.f32 %v1065
    %v1082 = vcvt.s32.f32 %v1066
    %v1083 = vcvt.s32.f32 %v1067
    %v1084 = vcvt.s32.f32 %v1068
    %v1085 = vcvt.s32.f32 %v1069
    %v1086 = vcvt.s32.f32 %v1070
    %v1087 = vcvt.s32.f32 %v1071
    %v1088 = vcvt.s32.f32 %v1072
    %v1089 = vcvt.s32.f32 %v1073
    %v1090 = vcvt.s32.f32 %v1074
    %vm1091 = vcmp.lt.s32.totalorder %v1027, 0
    %v1092 = vsub.s32 0, %v1027
    %v1093 = vsel %vm1091, %v1092, %v1027
    %v1094 = vshrl.u32 %v1093, 4
    %v1095 = vand.u32 %v1093, 15
    %v1096 = vsub.s32 0, %v1095
    %v1097 = vsel %vm1091, %v1096, %v1095
    %vm1098 = vcmp.lt.s32.totalorder %v1028, 0
    %v1099 = vsub.s32 0, %v1028
    %v1100 = vsel %vm1098, %v1099, %v1028
    %v1101 = vshrl.u32 %v1100, 4
    %v1102 = vand.u32 %v1100, 15
    %v1103 = vsub.s32 0, %v1102
    %v1104 = vsel %vm1098, %v1103, %v1102
    %vm1105 = vcmp.lt.s32.totalorder %v1029, 0
    %v1106 = vsub.s32 0, %v1029
    %v1107 = vsel %vm1105, %v1106, %v1029
    %v1108 = vshrl.u32 %v1107, 4
    %v1109 = vand.u32 %v1107, 15
    %v1110 = vsub.s32 0, %v1109
    %v1111 = vsel %vm1105, %v1110, %v1109
    %vm1112 = vcmp.lt.s32.totalorder %v1030, 0
    %v1113 = vsub.s32 0, %v1030
    %v1114 = vsel %vm1112, %v1113, %v1030
    %v1115 = vshrl.u32 %v1114, 4
    %v1116 = vand.u32 %v1114, 15
    %v1117 = vsub.s32 0, %v1116
    %v1118 = vsel %vm1112, %v1117, %v1116
    %vm1119 = vcmp.lt.s32.totalorder %v1031, 0
    %v1120 = vsub.s32 0, %v1031
    %v1121 = vsel %vm1119, %v1120, %v1031
    %v1122 = vshrl.u32 %v1121, 4
    %v1123 = vand.u32 %v1121, 15
    %v1124 = vsub.s32 0, %v1123
    %v1125 = vsel %vm1119, %v1124, %v1123
    %vm1126 = vcmp.lt.s32.totalorder %v1032, 0
    %v1127 = vsub.s32 0, %v1032
    %v1128 = vsel %vm1126, %v1127, %v1032
    %v1129 = vshrl.u32 %v1128, 4
    %v1130 = vand.u32 %v1128, 15
    %v1131 = vsub.s32 0, %v1130
    %v1132 = vsel %vm1126, %v1131, %v1130
    %vm1133 = vcmp.lt.s32.totalorder %v1033, 0
    %v1134 = vsub.s32 0, %v1033
    %v1135 = vsel %vm1133, %v1134, %v1033
    %v1136 = vshrl.u32 %v1135, 4
    %v1137 = vand.u32 %v1135, 15
    %v1138 = vsub.s32 0, %v1137
    %v1139 = vsel %vm1133, %v1138, %v1137
    %vm1140 = vcmp.lt.s32.totalorder %v1034, 0
    %v1141 = vsub.s32 0, %v1034
    %v1142 = vsel %vm1140, %v1141, %v1034
    %v1143 = vshrl.u32 %v1142, 4
    %v1144 = vand.u32 %v1142, 15
    %v1145 = vsub.s32 0, %v1144
    %v1146 = vsel %vm1140, %v1145, %v1144
    %vm1147 = vcmp.lt.s32.totalorder %v1035, 0
    %v1148 = vsub.s32 0, %v1035
    %v1149 = vsel %vm1147, %v1148, %v1035
    %v1150 = vshrl.u32 %v1149, 4
    %v1151 = vand.u32 %v1149, 15
    %v1152 = vsub.s32 0, %v1151
    %v1153 = vsel %vm1147, %v1152, %v1151
    %vm1154 = vcmp.lt.s32.totalorder %v1036, 0
    %v1155 = vsub.s32 0, %v1036
    %v1156 = vsel %vm1154, %v1155, %v1036
    %v1157 = vshrl.u32 %v1156, 4
    %v1158 = vand.u32 %v1156, 15
    %v1159 = vsub.s32 0, %v1158
    %v1160 = vsel %vm1154, %v1159, %v1158
    %vm1161 = vcmp.lt.s32.totalorder %v1037, 0
    %v1162 = vsub.s32 0, %v1037
    %v1163 = vsel %vm1161, %v1162, %v1037
    %v1164 = vshrl.u32 %v1163, 4
    %v1165 = vand.u32 %v1163, 15
    %v1166 = vsub.s32 0, %v1165
    %v1167 = vsel %vm1161, %v1166, %v1165
    %vm1168 = vcmp.lt.s32.totalorder %v1038, 0
    %v1169 = vsub.s32 0, %v1038
    %v1170 = vsel %vm1168, %v1169, %v1038
    %v1171 = vshrl.u32 %v1170, 4
    %v1172 = vand.u32 %v1170, 15
    %v1173 = vsub.s32 0, %v1172
    %v1174 = vsel %vm1168, %v1173, %v1172
    %vm1175 = vcmp.lt.s32.totalorder %v1039, 0
    %v1176 = vsub.s32 0, %v1039
    %v1177 = vsel %vm1175, %v1176, %v1039
    %v1178 = vshrl.u32 %v1177, 4
    %v1179 = vand.u32 %v1177, 15
    %v1180 = vsub.s32 0, %v1179
    %v1181 = vsel %vm1175, %v1180, %v1179
    %vm1182 = vcmp.lt.s32.totalorder %v1040, 0
    %v1183 = vsub.s32 0, %v1040
    %v1184 = vsel %vm1182, %v1183, %v1040
    %v1185 = vshrl.u32 %v1184, 4
    %v1186 = vand.u32 %v1184, 15
    %v1187 = vsub.s32 0, %v1186
    %v1188 = vsel %vm1182, %v1187, %v1186
    %vm1189 = vcmp.lt.s32.totalorder %v1041, 0
    %v1190 = vsub.s32 0, %v1041
    %v1191 = vsel %vm1189, %v1190, %v1041
    %v1192 = vshrl.u32 %v1191, 4
    %v1193 = vand.u32 %v1191, 15
    %v1194 = vsub.s32 0, %v1193
    %v1195 = vsel %vm1189, %v1194, %v1193
    %vm1196 = vcmp.lt.s32.totalorder %v1042, 0
    %v1197 = vsub.s32 0, %v1042
    %v1198 = vsel %vm1196, %v1197, %v1042
    %v1199 = vshrl.u32 %v1198, 4
    %v1200 = vand.u32 %v1198, 15
    %v1201 = vsub.s32 0, %v1200
    %v1202 = vsel %vm1196, %v1201, %v1200
    %vm1203 = vcmp.ne.s32.totalorder %v1097, 0
    %vm1204 = vcmp.ne.s32.totalorder %v1104, 0
    %vm1205 = vcmp.ne.s32.totalorder %v1111, 0
    %vm1206 = vcmp.ne.s32.totalorder %v1118, 0
    %vm1207 = vcmp.ne.s32.totalorder %v1125, 0
    %vm1208 = vcmp.ne.s32.totalorder %v1132, 0
    %vm1209 = vcmp.ne.s32.totalorder %v1139, 0
    %vm1210 = vcmp.ne.s32.totalorder %v1146, 0
    %vm1211 = vcmp.ne.s32.totalorder %v1153, 0
    %vm1212 = vcmp.ne.s32.totalorder %v1160, 0
    %vm1213 = vcmp.ne.s32.totalorder %v1167, 0
    %vm1214 = vcmp.ne.s32.totalorder %v1174, 0
    %vm1215 = vcmp.ne.s32.totalorder %v1181, 0
    %vm1216 = vcmp.ne.s32.totalorder %v1188, 0
    %vm1217 = vcmp.ne.s32.totalorder %v1195, 0
    %vm1218 = vcmp.ne.s32.totalorder %v1202, 0
    %vm1219 = vcmp.lt.s32.totalorder %v1097, 0
    %vm1220 = vcmp.lt.s32.totalorder %v1104, 0
    %vm1221 = vcmp.lt.s32.totalorder %v1111, 0
    %vm1222 = vcmp.lt.s32.totalorder %v1118, 0
    %vm1223 = vcmp.lt.s32.totalorder %v1125, 0
    %vm1224 = vcmp.lt.s32.totalorder %v1132, 0
    %vm1225 = vcmp.lt.s32.totalorder %v1139, 0
    %vm1226 = vcmp.lt.s32.totalorder %v1146, 0
    %vm1227 = vcmp.lt.s32.totalorder %v1153, 0
    %vm1228 = vcmp.lt.s32.totalorder %v1160, 0
    %vm1229 = vcmp.lt.s32.totalorder %v1167, 0
    %vm1230 = vcmp.lt.s32.totalorder %v1174, 0
    %vm1231 = vcmp.lt.s32.totalorder %v1181, 0
    %vm1232 = vcmp.lt.s32.totalorder %v1188, 0
    %vm1233 = vcmp.lt.s32.totalorder %v1195, 0
    %vm1234 = vcmp.lt.s32.totalorder %v1202, 0
    %vm1235 = vmand %vm1219, %vm1203
    %vm1236 = vmand %vm1220, %vm1204
    %vm1237 = vmand %vm1221, %vm1205
    %vm1238 = vmand %vm1222, %vm1206
    %vm1239 = vmand %vm1223, %vm1207
    %vm1240 = vmand %vm1224, %vm1208
    %vm1241 = vmand %vm1225, %vm1209
    %vm1242 = vmand %vm1226, %vm1210
    %vm1243 = vmand %vm1227, %vm1211
    %vm1244 = vmand %vm1228, %vm1212
    %vm1245 = vmand %vm1229, %vm1213
    %vm1246 = vmand %vm1230, %vm1214
    %vm1247 = vmand %vm1231, %vm1215
    %vm1248 = vmand %vm1232, %vm1216
    %vm1249 = vmand %vm1233, %vm1217
    %vm1250 = vmand %vm1234, %vm1218
    %v1251 = vadd.s32 %v1097, 16
    %v1252 = vadd.s32 %v1104, 16
    %v1253 = vadd.s32 %v1111, 16
    %v1254 = vadd.s32 %v1118, 16
    %v1255 = vadd.s32 %v1125, 16
    %v1256 = vadd.s32 %v1132, 16
    %v1257 = vadd.s32 %v1139, 16
    %v1258 = vadd.s32 %v1146, 16
    %v1259 = vadd.s32 %v1153, 16
    %v1260 = vadd.s32 %v1160, 16
    %v1261 = vadd.s32 %v1167, 16
    %v1262 = vadd.s32 %v1174, 16
    %v1263 = vadd.s32 %v1181, 16
    %v1264 = vadd.s32 %v1188, 16
    %v1265 = vadd.s32 %v1195, 16
    %v1266 = vadd.s32 %v1202, 16
    %v1267 = vsel %vm1235, %v1251, %v1097
    %v1268 = vsel %vm1236, %v1252, %v1104
    %v1269 = vsel %vm1237, %v1253, %v1111
    %v1270 = vsel %vm1238, %v1254, %v1118
    %v1271 = vsel %vm1239, %v1255, %v1125
    %v1272 = vsel %vm1240, %v1256, %v1132
    %v1273 = vsel %vm1241, %v1257, %v1139
    %v1274 = vsel %vm1242, %v1258, %v1146
    %v1275 = vsel %vm1243, %v1259, %v1153
    %v1276 = vsel %vm1244, %v1260, %v1160
    %v1277 = vsel %vm1245, %v1261, %v1167
    %v1278 = vsel %vm1246, %v1262, %v1174
    %v1279 = vsel %vm1247, %v1263, %v1181
    %v1280 = vsel %vm1248, %v1264, %v1188
    %v1281 = vsel %vm1249, %v1265, %v1195
    %v1282 = vsel %vm1250, %v1266, %v1202
    %vm1283 = vcmp.eq.s32.totalorder %v1267, 0
    %vm1284 = vcmp.eq.s32.totalorder %v1268, 0
    %vm1285 = vcmp.eq.s32.totalorder %v1269, 0
    %vm1286 = vcmp.eq.s32.totalorder %v1270, 0
    %vm1287 = vcmp.eq.s32.totalorder %v1271, 0
    %vm1288 = vcmp.eq.s32.totalorder %v1272, 0
    %vm1289 = vcmp.eq.s32.totalorder %v1273, 0
    %vm1290 = vcmp.eq.s32.totalorder %v1274, 0
    %vm1291 = vcmp.eq.s32.totalorder %v1275, 0
    %vm1292 = vcmp.eq.s32.totalorder %v1276, 0
    %vm1293 = vcmp.eq.s32.totalorder %v1277, 0
    %vm1294 = vcmp.eq.s32.totalorder %v1278, 0
    %vm1295 = vcmp.eq.s32.totalorder %v1279, 0
    %vm1296 = vcmp.eq.s32.totalorder %v1280, 0
    %vm1297 = vcmp.eq.s32.totalorder %v1281, 0
    %vm1298 = vcmp.eq.s32.totalorder %v1282, 0
    %vm1299 = vmand %vm1043, %vm1283
    %vm1300 = vmand %vm1044, %vm1284
    %vm1301 = vmand %vm1045, %vm1285
    %vm1302 = vmand %vm1046, %vm1286
    %vm1303 = vmand %vm1047, %vm1287
    %vm1304 = vmand %vm1048, %vm1288
    %vm1305 = vmand %vm1049, %vm1289
    %vm1306 = vmand %vm1050, %vm1290
    %vm1307 = vmand %vm1051, %vm1291
    %vm1308 = vmand %vm1052, %vm1292
    %vm1309 = vmand %vm1053, %vm1293
    %vm1310 = vmand %vm1054, %vm1294
    %vm1311 = vmand %vm1055, %vm1295
    %vm1312 = vmand %vm1056, %vm1296
    %vm1313 = vmand %vm1057, %vm1297
    %vm1314 = vmand %vm1058, %vm1298
    %v1315 = vsel %vm1299, 1, 0
    %v1316 = vsel %vm1300, 1, 0
    %v1317 = vsel %vm1301, 1, 0
    %v1318 = vsel %vm1302, 1, 0
    %v1319 = vsel %vm1303, 1, 0
    %v1320 = vsel %vm1304, 1, 0
    %v1321 = vsel %vm1305, 1, 0
    %v1322 = vsel %vm1306, 1, 0
    %v1323 = vsel %vm1307, 1, 0
    %v1324 = vsel %vm1308, 1, 0
    %v1325 = vsel %vm1309, 1, 0
    %v1326 = vsel %vm1310, 1, 0
    %v1327 = vsel %vm1311, 1, 0
    %v1328 = vsel %vm1312, 1, 0
    %v1329 = vsel %vm1313, 1, 0
    %v1330 = vsel %vm1314, 1, 0
    %v1331 = vcvt.s32.f32 %v1315
    %v1332 = vcvt.s32.f32 %v1316
    %v1333 = vcvt.s32.f32 %v1317
    %v1334 = vcvt.s32.f32 %v1318
    %v1335 = vcvt.s32.f32 %v1319
    %v1336 = vcvt.s32.f32 %v1320
    %v1337 = vcvt.s32.f32 %v1321
    %v1338 = vcvt.s32.f32 %v1322
    %v1339 = vcvt.s32.f32 %v1323
    %v1340 = vcvt.s32.f32 %v1324
    %v1341 = vcvt.s32.f32 %v1325
    %v1342 = vcvt.s32.f32 %v1326
    %v1343 = vcvt.s32.f32 %v1327
    %v1344 = vcvt.s32.f32 %v1328
    %v1345 = vcvt.s32.f32 %v1329
    %v1346 = vcvt.s32.f32 %v1330
    %vm1347 = vcmp.lt.s32.totalorder %v1027, 0
    %v1348 = vsub.s32 0, %v1027
    %v1349 = vsel %vm1347, %v1348, %v1027
    %v1350 = vshrl.u32 %v1349, 2
    %v1351 = vand.u32 %v1349, 3
    %v1352 = vsub.s32 0, %v1351
    %v1353 = vsel %vm1347, %v1352, %v1351
    %vm1354 = vcmp.lt.s32.totalorder %v1028, 0
    %v1355 = vsub.s32 0, %v1028
    %v1356 = vsel %vm1354, %v1355, %v1028
    %v1357 = vshrl.u32 %v1356, 2
    %v1358 = vand.u32 %v1356, 3
    %v1359 = vsub.s32 0, %v1358
    %v1360 = vsel %vm1354, %v1359, %v1358
    %vm1361 = vcmp.lt.s32.totalorder %v1029, 0
    %v1362 = vsub.s32 0, %v1029
    %v1363 = vsel %vm1361, %v1362, %v1029
    %v1364 = vshrl.u32 %v1363, 2
    %v1365 = vand.u32 %v1363, 3
    %v1366 = vsub.s32 0, %v1365
    %v1367 = vsel %vm1361, %v1366, %v1365
    %vm1368 = vcmp.lt.s32.totalorder %v1030, 0
    %v1369 = vsub.s32 0, %v1030
    %v1370 = vsel %vm1368, %v1369, %v1030
    %v1371 = vshrl.u32 %v1370, 2
    %v1372 = vand.u32 %v1370, 3
    %v1373 = vsub.s32 0, %v1372
    %v1374 = vsel %vm1368, %v1373, %v1372
    %vm1375 = vcmp.lt.s32.totalorder %v1031, 0
    %v1376 = vsub.s32 0, %v1031
    %v1377 = vsel %vm1375, %v1376, %v1031
    %v1378 = vshrl.u32 %v1377, 2
    %v1379 = vand.u32 %v1377, 3
    %v1380 = vsub.s32 0, %v1379
    %v1381 = vsel %vm1375, %v1380, %v1379
    %vm1382 = vcmp.lt.s32.totalorder %v1032, 0
    %v1383 = vsub.s32 0, %v1032
    %v1384 = vsel %vm1382, %v1383, %v1032
    %v1385 = vshrl.u32 %v1384, 2
    %v1386 = vand.u32 %v1384, 3
    %v1387 = vsub.s32 0, %v1386
    %v1388 = vsel %vm1382, %v1387, %v1386
    %vm1389 = vcmp.lt.s32.totalorder %v1033, 0
    %v1390 = vsub.s32 0, %v1033
    %v1391 = vsel %vm1389, %v1390, %v1033
    %v1392 = vshrl.u32 %v1391, 2
    %v1393 = vand.u32 %v1391, 3
    %v1394 = vsub.s32 0, %v1393
    %v1395 = vsel %vm1389, %v1394, %v1393
    %vm1396 = vcmp.lt.s32.totalorder %v1034, 0
    %v1397 = vsub.s32 0, %v1034
    %v1398 = vsel %vm1396, %v1397, %v1034
    %v1399 = vshrl.u32 %v1398, 2
    %v1400 = vand.u32 %v1398, 3
    %v1401 = vsub.s32 0, %v1400
    %v1402 = vsel %vm1396, %v1401, %v1400
    %vm1403 = vcmp.lt.s32.totalorder %v1035, 0
    %v1404 = vsub.s32 0, %v1035
    %v1405 = vsel %vm1403, %v1404, %v1035
    %v1406 = vshrl.u32 %v1405, 2
    %v1407 = vand.u32 %v1405, 3
    %v1408 = vsub.s32 0, %v1407
    %v1409 = vsel %vm1403, %v1408, %v1407
    %vm1410 = vcmp.lt.s32.totalorder %v1036, 0
    %v1411 = vsub.s32 0, %v1036
    %v1412 = vsel %vm1410, %v1411, %v1036
    %v1413 = vshrl.u32 %v1412, 2
    %v1414 = vand.u32 %v1412, 3
    %v1415 = vsub.s32 0, %v1414
    %v1416 = vsel %vm1410, %v1415, %v1414
    %vm1417 = vcmp.lt.s32.totalorder %v1037, 0
    %v1418 = vsub.s32 0, %v1037
    %v1419 = vsel %vm1417, %v1418, %v1037
    %v1420 = vshrl.u32 %v1419, 2
    %v1421 = vand.u32 %v1419, 3
    %v1422 = vsub.s32 0, %v1421
    %v1423 = vsel %vm1417, %v1422, %v1421
    %vm1424 = vcmp.lt.s32.totalorder %v1038, 0
    %v1425 = vsub.s32 0, %v1038
    %v1426 = vsel %vm1424, %v1425, %v1038
    %v1427 = vshrl.u32 %v1426, 2
    %v1428 = vand.u32 %v1426, 3
    %v1429 = vsub.s32 0, %v1428
    %v1430 = vsel %vm1424, %v1429, %v1428
    %vm1431 = vcmp.lt.s32.totalorder %v1039, 0
    %v1432 = vsub.s32 0, %v1039
    %v1433 = vsel %vm1431, %v1432, %v1039
    %v1434 = vshrl.u32 %v1433, 2
    %v1435 = vand.u32 %v1433, 3
    %v1436 = vsub.s32 0, %v1435
    %v1437 = vsel %vm1431, %v1436, %v1435
    %vm1438 = vcmp.lt.s32.totalorder %v1040, 0
    %v1439 = vsub.s32 0, %v1040
    %v1440 = vsel %vm1438, %v1439, %v1040
    %v1441 = vshrl.u32 %v1440, 2
    %v1442 = vand.u32 %v1440, 3
    %v1443 = vsub.s32 0, %v1442
    %v1444 = vsel %vm1438, %v1443, %v1442
    %vm1445 = vcmp.lt.s32.totalorder %v1041, 0
    %v1446 = vsub.s32 0, %v1041
    %v1447 = vsel %vm1445, %v1446, %v1041
    %v1448 = vshrl.u32 %v1447, 2
    %v1449 = vand.u32 %v1447, 3
    %v1450 = vsub.s32 0, %v1449
    %v1451 = vsel %vm1445, %v1450, %v1449
    %vm1452 = vcmp.lt.s32.totalorder %v1042, 0
    %v1453 = vsub.s32 0, %v1042
    %v1454 = vsel %vm1452, %v1453, %v1042
    %v1455 = vshrl.u32 %v1454, 2
    %v1456 = vand.u32 %v1454, 3
    %v1457 = vsub.s32 0, %v1456
    %v1458 = vsel %vm1452, %v1457, %v1456
    %vm1459 = vcmp.ne.s32.totalorder %v1353, 0
    %vm1460 = vcmp.ne.s32.totalorder %v1360, 0
    %vm1461 = vcmp.ne.s32.totalorder %v1367, 0
    %vm1462 = vcmp.ne.s32.totalorder %v1374, 0
    %vm1463 = vcmp.ne.s32.totalorder %v1381, 0
    %vm1464 = vcmp.ne.s32.totalorder %v1388, 0
    %vm1465 = vcmp.ne.s32.totalorder %v1395, 0
    %vm1466 = vcmp.ne.s32.totalorder %v1402, 0
    %vm1467 = vcmp.ne.s32.totalorder %v1409, 0
    %vm1468 = vcmp.ne.s32.totalorder %v1416, 0
    %vm1469 = vcmp.ne.s32.totalorder %v1423, 0
    %vm1470 = vcmp.ne.s32.totalorder %v1430, 0
    %vm1471 = vcmp.ne.s32.totalorder %v1437, 0
    %vm1472 = vcmp.ne.s32.totalorder %v1444, 0
    %vm1473 = vcmp.ne.s32.totalorder %v1451, 0
    %vm1474 = vcmp.ne.s32.totalorder %v1458, 0
    %vm1475 = vcmp.lt.s32.totalorder %v1353, 0
    %vm1476 = vcmp.lt.s32.totalorder %v1360, 0
    %vm1477 = vcmp.lt.s32.totalorder %v1367, 0
    %vm1478 = vcmp.lt.s32.totalorder %v1374, 0
    %vm1479 = vcmp.lt.s32.totalorder %v1381, 0
    %vm1480 = vcmp.lt.s32.totalorder %v1388, 0
    %vm1481 = vcmp.lt.s32.totalorder %v1395, 0
    %vm1482 = vcmp.lt.s32.totalorder %v1402, 0
    %vm1483 = vcmp.lt.s32.totalorder %v1409, 0
    %vm1484 = vcmp.lt.s32.totalorder %v1416, 0
    %vm1485 = vcmp.lt.s32.totalorder %v1423, 0
    %vm1486 = vcmp.lt.s32.totalorder %v1430, 0
    %vm1487 = vcmp.lt.s32.totalorder %v1437, 0
    %vm1488 = vcmp.lt.s32.totalorder %v1444, 0
    %vm1489 = vcmp.lt.s32.totalorder %v1451, 0
    %vm1490 = vcmp.lt.s32.totalorder %v1458, 0
    %vm1491 = vmand %vm1475, %vm1459
    %vm1492 = vmand %vm1476, %vm1460
    %vm1493 = vmand %vm1477, %vm1461
    %vm1494 = vmand %vm1478, %vm1462
    %vm1495 = vmand %vm1479, %vm1463
    %vm1496 = vmand %vm1480, %vm1464
    %vm1497 = vmand %vm1481, %vm1465
    %vm1498 = vmand %vm1482, %vm1466
    %vm1499 = vmand %vm1483, %vm1467
    %vm1500 = vmand %vm1484, %vm1468
    %vm1501 = vmand %vm1485, %vm1469
    %vm1502 = vmand %vm1486, %vm1470
    %vm1503 = vmand %vm1487, %vm1471
    %vm1504 = vmand %vm1488, %vm1472
    %vm1505 = vmand %vm1489, %vm1473
    %vm1506 = vmand %vm1490, %vm1474
    %v1507 = vadd.s32 %v1353, 4
    %v1508 = vadd.s32 %v1360, 4
    %v1509 = vadd.s32 %v1367, 4
    %v1510 = vadd.s32 %v1374, 4
    %v1511 = vadd.s32 %v1381, 4
    %v1512 = vadd.s32 %v1388, 4
    %v1513 = vadd.s32 %v1395, 4
    %v1514 = vadd.s32 %v1402, 4
    %v1515 = vadd.s32 %v1409, 4
    %v1516 = vadd.s32 %v1416, 4
    %v1517 = vadd.s32 %v1423, 4
    %v1518 = vadd.s32 %v1430, 4
    %v1519 = vadd.s32 %v1437, 4
    %v1520 = vadd.s32 %v1444, 4
    %v1521 = vadd.s32 %v1451, 4
    %v1522 = vadd.s32 %v1458, 4
    %v1523 = vsel %vm1491, %v1507, %v1353
    %v1524 = vsel %vm1492, %v1508, %v1360
    %v1525 = vsel %vm1493, %v1509, %v1367
    %v1526 = vsel %vm1494, %v1510, %v1374
    %v1527 = vsel %vm1495, %v1511, %v1381
    %v1528 = vsel %vm1496, %v1512, %v1388
    %v1529 = vsel %vm1497, %v1513, %v1395
    %v1530 = vsel %vm1498, %v1514, %v1402
    %v1531 = vsel %vm1499, %v1515, %v1409
    %v1532 = vsel %vm1500, %v1516, %v1416
    %v1533 = vsel %vm1501, %v1517, %v1423
    %v1534 = vsel %vm1502, %v1518, %v1430
    %v1535 = vsel %vm1503, %v1519, %v1437
    %v1536 = vsel %vm1504, %v1520, %v1444
    %v1537 = vsel %vm1505, %v1521, %v1451
    %v1538 = vsel %vm1506, %v1522, %v1458
    %vm1539 = vcmp.eq.s32.totalorder %v1523, 0
    %vm1540 = vcmp.eq.s32.totalorder %v1524, 0
    %vm1541 = vcmp.eq.s32.totalorder %v1525, 0
    %vm1542 = vcmp.eq.s32.totalorder %v1526, 0
    %vm1543 = vcmp.eq.s32.totalorder %v1527, 0
    %vm1544 = vcmp.eq.s32.totalorder %v1528, 0
    %vm1545 = vcmp.eq.s32.totalorder %v1529, 0
    %vm1546 = vcmp.eq.s32.totalorder %v1530, 0
    %vm1547 = vcmp.eq.s32.totalorder %v1531, 0
    %vm1548 = vcmp.eq.s32.totalorder %v1532, 0
    %vm1549 = vcmp.eq.s32.totalorder %v1533, 0
    %vm1550 = vcmp.eq.s32.totalorder %v1534, 0
    %vm1551 = vcmp.eq.s32.totalorder %v1535, 0
    %vm1552 = vcmp.eq.s32.totalorder %v1536, 0
    %vm1553 = vcmp.eq.s32.totalorder %v1537, 0
    %vm1554 = vcmp.eq.s32.totalorder %v1538, 0
    %vm1555 = vmand %vm1043, %vm1539
    %vm1556 = vmand %vm1044, %vm1540
    %vm1557 = vmand %vm1045, %vm1541
    %vm1558 = vmand %vm1046, %vm1542
    %vm1559 = vmand %vm1047, %vm1543
    %vm1560 = vmand %vm1048, %vm1544
    %vm1561 = vmand %vm1049, %vm1545
    %vm1562 = vmand %vm1050, %vm1546
    %vm1563 = vmand %vm1051, %vm1547
    %vm1564 = vmand %vm1052, %vm1548
    %vm1565 = vmand %vm1053, %vm1549
    %vm1566 = vmand %vm1054, %vm1550
    %vm1567 = vmand %vm1055, %vm1551
    %vm1568 = vmand %vm1056, %vm1552
    %vm1569 = vmand %vm1057, %vm1553
    %vm1570 = vmand %vm1058, %vm1554
    %v1571 = vsel %vm1555, 1, 0
    %v1572 = vsel %vm1556, 1, 0
    %v1573 = vsel %vm1557, 1, 0
    %v1574 = vsel %vm1558, 1, 0
    %v1575 = vsel %vm1559, 1, 0
    %v1576 = vsel %vm1560, 1, 0
    %v1577 = vsel %vm1561, 1, 0
    %v1578 = vsel %vm1562, 1, 0
    %v1579 = vsel %vm1563, 1, 0
    %v1580 = vsel %vm1564, 1, 0
    %v1581 = vsel %vm1565, 1, 0
    %v1582 = vsel %vm1566, 1, 0
    %v1583 = vsel %vm1567, 1, 0
    %v1584 = vsel %vm1568, 1, 0
    %v1585 = vsel %vm1569, 1, 0
    %v1586 = vsel %vm1570, 1, 0
    %v1587 = vcvt.s32.f32 %v1571
    %v1588 = vcvt.s32.f32 %v1572
    %v1589 = vcvt.s32.f32 %v1573
    %v1590 = vcvt.s32.f32 %v1574
    %v1591 = vcvt.s32.f32 %v1575
    %v1592 = vcvt.s32.f32 %v1576
    %v1593 = vcvt.s32.f32 %v1577
    %v1594 = vcvt.s32.f32 %v1578
    %v1595 = vcvt.s32.f32 %v1579
    %v1596 = vcvt.s32.f32 %v1580
    %v1597 = vcvt.s32.f32 %v1581
    %v1598 = vcvt.s32.f32 %v1582
    %v1599 = vcvt.s32.f32 %v1583
    %v1600 = vcvt.s32.f32 %v1584
    %v1601 = vcvt.s32.f32 %v1585
    %v1602 = vcvt.s32.f32 %v1586
    %v1603 = vld [vmem:[#allocation2] sm:$0x3]
    %v1604 = vmul.f32 %v816, %v1075
    %v1605 = vmul.f32 %v820, %v1076
    %v1606 = vmul.f32 %v824, %v1077
    %v1607 = vmul.f32 %v828, %v1078
    %v1608 = vmul.f32 %v832, %v1079
    %v1609 = vmul.f32 %v836, %v1080
    %v1610 = vmul.f32 %v840, %v1081
    %v1611 = vmul.f32 %v844, %v1082
    %v1612 = vmul.f32 %v848, %v1083
    %v1613 = vmul.f32 %v852, %v1084
    %v1614 = vmul.f32 %v856, %v1085
    %v1615 = vmul.f32 %v860, %v1086
    %v1616 = vmul.f32 %v864, %v1087
    %v1617 = vmul.f32 %v868, %v1088
    %v1618 = vmul.f32 %v872, %v1089
    %v1619 = vmul.f32 %v876, %v1090
    %v1620 = vmul.f32 %v880, %v1075
    %v1621 = vmul.f32 %v884, %v1076
    %v1622 = vmul.f32 %v888, %v1077
    %v1623 = vmul.f32 %v892, %v1078
    %v1624 = vmul.f32 %v896, %v1079
    %v1625 = vmul.f32 %v900, %v1080
    %v1626 = vmul.f32 %v904, %v1081
    %v1627 = vmul.f32 %v908, %v1082
    %v1628 = vmul.f32 %v912, %v1083
    %v1629 = vmul.f32 %v916, %v1084
    %v1630 = vmul.f32 %v920, %v1085
    %v1631 = vmul.f32 %v924, %v1086
    %v1632 = vmul.f32 %v928, %v1087
    %v1633 = vmul.f32 %v932, %v1088
    %v1634 = vmul.f32 %v936, %v1089
    %v1635 = vmul.f32 %v940, %v1090
    %v1636 = vadd.f32 %v1604, %v1605
    %v1637 = vadd.f32 %v1636, %v1606
    %v1638 = vadd.f32 %v1637, %v1607
    %v1639 = vadd.f32 %v1638, %v1608
    %v1640 = vadd.f32 %v1639, %v1609
    %v1641 = vadd.f32 %v1640, %v1610
    %v1642 = vadd.f32 %v1641, %v1611
    %v1643 = vadd.f32 %v1642, %v1612
    %v1644 = vadd.f32 %v1643, %v1613
    %v1645 = vadd.f32 %v1644, %v1614
    %v1646 = vadd.f32 %v1645, %v1615
    %v1647 = vadd.f32 %v1646, %v1616
    %v1648 = vadd.f32 %v1647, %v1617
    %v1649 = vadd.f32 %v1648, %v1618
    %v1650 = vadd.f32 %v1649, %v1619
    %v1651 = vrot.slane %v1650, 4
    %v1652 = vadd.f32 %v1650, %v1651
    %v1653 = vrot.slane %v1652, 2
    %v1654 = vadd.f32 %v1652, %v1653
    %v1655 = vrot.slane %v1654, 1
    %v1656 = vadd.f32 %v1654, %v1655
    %v1657 = vadd.f32 %v1620, %v1621
    %v1658 = vadd.f32 %v1657, %v1622
    %v1659 = vadd.f32 %v1658, %v1623
    %v1660 = vadd.f32 %v1659, %v1624
    %v1661 = vadd.f32 %v1660, %v1625
    %v1662 = vadd.f32 %v1661, %v1626
    %v1663 = vadd.f32 %v1662, %v1627
    %v1664 = vadd.f32 %v1663, %v1628
    %v1665 = vadd.f32 %v1664, %v1629
    %v1666 = vadd.f32 %v1665, %v1630
    %v1667 = vadd.f32 %v1666, %v1631
    %v1668 = vadd.f32 %v1667, %v1632
    %v1669 = vadd.f32 %v1668, %v1633
    %v1670 = vadd.f32 %v1669, %v1634
    %v1671 = vadd.f32 %v1670, %v1635
    %v1672 = vrot.slane %v1671, 4
    %v1673 = vadd.f32 %v1671, %v1672
    %v1674 = vrot.slane %v1673, 2
    %v1675 = vadd.f32 %v1673, %v1674
    %v1676 = vrot.slane %v1675, 1
    %v1677 = vadd.f32 %v1675, %v1676
    %vm1680 = vcmask 1041409
    %v1681 = vsel %vm1680, %v1677, %v1656
    %v1683 = vadd.f32 %v1603, %v1681
    %1684 = vst [vmem:[#allocation2] sm:$0x3] %v1683
    %v1685 = vld [vmem:[#allocation3] sm:$0xf]
    %v1686 = vmul.f32 %v817, %v1331
    %v1687 = vmul.f32 %v818, %v1331
    %v1688 = vmul.f32 %v821, %v1332
    %v1689 = vmul.f32 %v822, %v1332
    %v1690 = vmul.f32 %v825, %v1333
    %v1691 = vmul.f32 %v826, %v1333
    %v1692 = vmul.f32 %v829, %v1334
    %v1693 = vmul.f32 %v830, %v1334
    %v1694 = vmul.f32 %v833, %v1335
    %v1695 = vmul.f32 %v834, %v1335
    %v1696 = vmul.f32 %v837, %v1336
    %v1697 = vmul.f32 %v838, %v1336
    %v1698 = vmul.f32 %v841, %v1337
    %v1699 = vmul.f32 %v842, %v1337
    %v1700 = vmul.f32 %v845, %v1338
    %v1701 = vmul.f32 %v846, %v1338
    %v1702 = vmul.f32 %v849, %v1339
    %v1703 = vmul.f32 %v850, %v1339
    %v1704 = vmul.f32 %v853, %v1340
    %v1705 = vmul.f32 %v854, %v1340
    %v1706 = vmul.f32 %v857, %v1341
    %v1707 = vmul.f32 %v858, %v1341
    %v1708 = vmul.f32 %v861, %v1342
    %v1709 = vmul.f32 %v862, %v1342
    %v1710 = vmul.f32 %v865, %v1343
    %v1711 = vmul.f32 %v866, %v1343
    %v1712 = vmul.f32 %v869, %v1344
    %v1713 = vmul.f32 %v870, %v1344
    %v1714 = vmul.f32 %v873, %v1345
    %v1715 = vmul.f32 %v874, %v1345
    %v1716 = vmul.f32 %v877, %v1346
    %v1717 = vmul.f32 %v878, %v1346
    %v1718 = vmul.f32 %v881, %v1331
    %v1719 = vmul.f32 %v882, %v1331
    %v1720 = vmul.f32 %v885, %v1332
    %v1721 = vmul.f32 %v886, %v1332
    %v1722 = vmul.f32 %v889, %v1333
    %v1723 = vmul.f32 %v890, %v1333
    %v1724 = vmul.f32 %v893, %v1334
    %v1725 = vmul.f32 %v894, %v1334
    %v1726 = vmul.f32 %v897, %v1335
    %v1727 = vmul.f32 %v898, %v1335
    %v1728 = vmul.f32 %v901, %v1336
    %v1729 = vmul.f32 %v902, %v1336
    %v1730 = vmul.f32 %v905, %v1337
    %v1731 = vmul.f32 %v906, %v1337
    %v1732 = vmul.f32 %v909, %v1338
    %v1733 = vmul.f32 %v910, %v1338
    %v1734 = vmul.f32 %v913, %v1339
    %v1735 = vmul.f32 %v914, %v1339
    %v1736 = vmul.f32 %v917, %v1340
    %v1737 = vmul.f32 %v918, %v1340
    %v1738 = vmul.f32 %v921, %v1341
    %v1739 = vmul.f32 %v922, %v1341
    %v1740 = vmul.f32 %v925, %v1342
    %v1741 = vmul.f32 %v926, %v1342
    %v1742 = vmul.f32 %v929, %v1343
    %v1743 = vmul.f32 %v930, %v1343
    %v1744 = vmul.f32 %v933, %v1344
    %v1745 = vmul.f32 %v934, %v1344
    %v1746 = vmul.f32 %v937, %v1345
    %v1747 = vmul.f32 %v938, %v1345
    %v1748 = vmul.f32 %v941, %v1346
    %v1749 = vmul.f32 %v942, %v1346
    %v1750 = vadd.f32 %v1686, %v1688
    %v1751 = vadd.f32 %v1750, %v1690
    %v1752 = vadd.f32 %v1751, %v1692
    %v1753 = vadd.f32 %v1752, %v1694
    %v1754 = vadd.f32 %v1753, %v1696
    %v1755 = vadd.f32 %v1754, %v1698
    %v1756 = vadd.f32 %v1755, %v1700
    %v1757 = vadd.f32 %v1756, %v1702
    %v1758 = vadd.f32 %v1757, %v1704
    %v1759 = vadd.f32 %v1758, %v1706
    %v1760 = vadd.f32 %v1759, %v1708
    %v1761 = vadd.f32 %v1760, %v1710
    %v1762 = vadd.f32 %v1761, %v1712
    %v1763 = vadd.f32 %v1762, %v1714
    %v1764 = vadd.f32 %v1763, %v1716
    %v1765 = vrot.slane %v1764, 4
    %v1766 = vadd.f32 %v1764, %v1765
    %v1767 = vrot.slane %v1766, 2
    %v1768 = vadd.f32 %v1766, %v1767
    %v1769 = vrot.slane %v1768, 1
    %v1770 = vadd.f32 %v1768, %v1769
    %v1771 = vadd.f32 %v1687, %v1689
    %v1772 = vadd.f32 %v1771, %v1691
    %v1773 = vadd.f32 %v1772, %v1693
    %v1774 = vadd.f32 %v1773, %v1695
    %v1775 = vadd.f32 %v1774, %v1697
    %v1776 = vadd.f32 %v1775, %v1699
    %v1777 = vadd.f32 %v1776, %v1701
    %v1778 = vadd.f32 %v1777, %v1703
    %v1779 = vadd.f32 %v1778, %v1705
    %v1780 = vadd.f32 %v1779, %v1707
    %v1781 = vadd.f32 %v1780, %v1709
    %v1782 = vadd.f32 %v1781, %v1711
    %v1783 = vadd.f32 %v1782, %v1713
    %v1784 = vadd.f32 %v1783, %v1715
    %v1785 = vadd.f32 %v1784, %v1717
    %v1786 = vrot.slane %v1785, 4
    %v1787 = vadd.f32 %v1785, %v1786
    %v1788 = vrot.slane %v1787, 2
    %v1789 = vadd.f32 %v1787, %v1788
    %v1790 = vrot.slane %v1789, 1
    %v1791 = vadd.f32 %v1789, %v1790
    %v1792 = vadd.f32 %v1718, %v1720
    %v1793 = vadd.f32 %v1792, %v1722
    %v1794 = vadd.f32 %v1793, %v1724
    %v1795 = vadd.f32 %v1794, %v1726
    %v1796 = vadd.f32 %v1795, %v1728
    %v1797 = vadd.f32 %v1796, %v1730
    %v1798 = vadd.f32 %v1797, %v1732
    %v1799 = vadd.f32 %v1798, %v1734
    %v1800 = vadd.f32 %v1799, %v1736
    %v1801 = vadd.f32 %v1800, %v1738
    %v1802 = vadd.f32 %v1801, %v1740
    %v1803 = vadd.f32 %v1802, %v1742
    %v1804 = vadd.f32 %v1803, %v1744
    %v1805 = vadd.f32 %v1804, %v1746
    %v1806 = vadd.f32 %v1805, %v1748
    %v1807 = vrot.slane %v1806, 4
    %v1808 = vadd.f32 %v1806, %v1807
    %v1809 = vrot.slane %v1808, 2
    %v1810 = vadd.f32 %v1808, %v1809
    %v1811 = vrot.slane %v1810, 1
    %v1812 = vadd.f32 %v1810, %v1811
    %v1813 = vadd.f32 %v1719, %v1721
    %v1814 = vadd.f32 %v1813, %v1723
    %v1815 = vadd.f32 %v1814, %v1725
    %v1816 = vadd.f32 %v1815, %v1727
    %v1817 = vadd.f32 %v1816, %v1729
    %v1818 = vadd.f32 %v1817, %v1731
    %v1819 = vadd.f32 %v1818, %v1733
    %v1820 = vadd.f32 %v1819, %v1735
    %v1821 = vadd.f32 %v1820, %v1737
    %v1822 = vadd.f32 %v1821, %v1739
    %v1823 = vadd.f32 %v1822, %v1741
    %v1824 = vadd.f32 %v1823, %v1743
    %v1825 = vadd.f32 %v1824, %v1745
    %v1826 = vadd.f32 %v1825, %v1747
    %v1827 = vadd.f32 %v1826, %v1749
    %v1828 = vrot.slane %v1827, 4
    %v1829 = vadd.f32 %v1827, %v1828
    %v1830 = vrot.slane %v1829, 2
    %v1831 = vadd.f32 %v1829, %v1830
    %v1832 = vrot.slane %v1831, 1
    %v1833 = vadd.f32 %v1831, %v1832
    %v1838 = vrot.slane %v1791, 6
    %v1839 = vrot.slane %v1833, 6
    %vm1840 = vcmask 1041408
    %v1841 = vsel %vm1840, %v1770, %v1838
    %v1842 = vsel %vm1840, %v1812, %v1839
    %vm1843 = vcmask 1044484
    %v1844 = vsel %vm1843, %v1841, %v1841
    %vm1845 = vcmask 1046534
    %v1846 = vsel %vm1845, %v1841, %v1844
    %v1847 = vrot.slane %v1842, 7
    %v1848 = vsel %vm1680, %v1847, %v1846
    %vm1849 = vcmask 1043459
    %v1850 = vsel %vm1849, %v1847, %v1848
    %vm1851 = vcmask 1045509
    %v1852 = vsel %vm1851, %v1847, %v1850
    %vm1853 = vcmask 1047559
    %v1854 = vsel %vm1853, %v1847, %v1852
    %v1856 = vadd.f32 %v1685, %v1854
    %1857 = vst [vmem:[#allocation3] sm:$0xf] %v1856
    %v1858 = vld [vmem:[#allocation4] sm:$0x3]
    %v1859 = vmul.f32 %v819, %v1587
    %v1860 = vmul.f32 %v823, %v1588
    %v1861 = vmul.f32 %v827, %v1589
    %v1862 = vmul.f32 %v831, %v1590
    %v1863 = vmul.f32 %v835, %v1591
    %v1864 = vmul.f32 %v839, %v1592
    %v1865 = vmul.f32 %v843, %v1593
    %v1866 = vmul.f32 %v847, %v1594
    %v1867 = vmul.f32 %v851, %v1595
    %v1868 = vmul.f32 %v855, %v1596
    %v1869 = vmul.f32 %v859, %v1597
    %v1870 = vmul.f32 %v863, %v1598
    %v1871 = vmul.f32 %v867, %v1599
    %v1872 = vmul.f32 %v871, %v1600
    %v1873 = vmul.f32 %v875, %v1601
    %v1874 = vmul.f32 %v879, %v1602
    %v1875 = vmul.f32 %v883, %v1587
    %v1876 = vmul.f32 %v887, %v1588
    %v1877 = vmul.f32 %v891, %v1589
    %v1878 = vmul.f32 %v895, %v1590
    %v1879 = vmul.f32 %v899, %v1591
    %v1880 = vmul.f32 %v903, %v1592
    %v1881 = vmul.f32 %v907, %v1593
    %v1882 = vmul.f32 %v911, %v1594
    %v1883 = vmul.f32 %v915, %v1595
    %v1884 = vmul.f32 %v919, %v1596
    %v1885 = vmul.f32 %v923, %v1597
    %v1886 = vmul.f32 %v927, %v1598
    %v1887 = vmul.f32 %v931, %v1599
    %v1888 = vmul.f32 %v935, %v1600
    %v1889 = vmul.f32 %v939, %v1601
    %v1890 = vmul.f32 %v943, %v1602
    %v1891 = vadd.f32 %v1859, %v1860
    %v1892 = vadd.f32 %v1891, %v1861
    %v1893 = vadd.f32 %v1892, %v1862
    %v1894 = vadd.f32 %v1893, %v1863
    %v1895 = vadd.f32 %v1894, %v1864
    %v1896 = vadd.f32 %v1895, %v1865
    %v1897 = vadd.f32 %v1896, %v1866
    %v1898 = vadd.f32 %v1897, %v1867
    %v1899 = vadd.f32 %v1898, %v1868
    %v1900 = vadd.f32 %v1899, %v1869
    %v1901 = vadd.f32 %v1900, %v1870
    %v1902 = vadd.f32 %v1901, %v1871
    %v1903 = vadd.f32 %v1902, %v1872
    %v1904 = vadd.f32 %v1903, %v1873
    %v1905 = vadd.f32 %v1904, %v1874
    %v1906 = vrot.slane %v1905, 4
    %v1907 = vadd.f32 %v1905, %v1906
    %v1908 = vrot.slane %v1907, 2
    %v1909 = vadd.f32 %v1907, %v1908
    %v1910 = vrot.slane %v1909, 1
    %v1911 = vadd.f32 %v1909, %v1910
    %v1912 = vadd.f32 %v1875, %v1876
    %v1913 = vadd.f32 %v1912, %v1877
    %v1914 = vadd.f32 %v1913, %v1878
    %v1915 = vadd.f32 %v1914, %v1879
    %v1916 = vadd.f32 %v1915, %v1880
    %v1917 = vadd.f32 %v1916, %v1881
    %v1918 = vadd.f32 %v1917, %v1882
    %v1919 = vadd.f32 %v1918, %v1883
    %v1920 = vadd.f32 %v1919, %v1884
    %v1921 = vadd.f32 %v1920, %v1885
    %v1922 = vadd.f32 %v1921, %v1886
    %v1923 = vadd.f32 %v1922, %v1887
    %v1924 = vadd.f32 %v1923, %v1888
    %v1925 = vadd.f32 %v1924, %v1889
    %v1926 = vadd.f32 %v1925, %v1890
    %v1927 = vrot.slane %v1926, 4
    %v1928 = vadd.f32 %v1926, %v1927
    %v1929 = vrot.slane %v1928, 2
    %v1930 = vadd.f32 %v1928, %v1929
    %v1931 = vrot.slane %v1930, 1
    %v1932 = vadd.f32 %v1930, %v1931
    %v1935 = vsel %vm1680, %v1932, %v1911
    %v1937 = vadd.f32 %v1858, %v1935
    %1938 = vst [vmem:[#allocation4] sm:$0x3] %v1937
    // Predicated region
    $region62: #{tpu_custom_call.1} parent=1 // pred_check
      %p1939 = pneg %p123
    $region63: #{tpu_custom_call.1} parent=1 // pred_check_branch
      %1941 = sbr.rel (%p1939) target = $region65
    $region64: #{tpu_custom_call.1} parent=1 // pred_region
      %v1942 = vld [vmem:[#allocation2] sm:$0x3]
      %v1943 = vmul.f32 %v1942, 0.03125
      %v1944 = vld [vmem:[#allocation3] sm:$0xf]
      %v1945 = vmul.f32 %v1944, 0.5
      %v1946 = vld [vmem:[#allocation4] sm:$0x3]
      %v1947 = vmul.f32 %v1946, 0.125
      %1949 = vst [vmem:[#allocation1] ss:$4 sm:$0xff] %v1945
      %v1950 = vld.sshfl [vmem:[#allocation1] sm:$0xff pattern:$0x73625140]
      %v1951 = vld.sshfl [vmem:[#allocation1 + $0x8] sm:$0xff pattern:$0x73625140]
      %v1954 = vpack.c.bf16 %v1943, %v1943
      %v1955 = vpack.c.bf16 %v1950, %v1950
      %v1956 = vpack.c.bf16 %v1951, %v1951
      %v1957 = vpack.c.bf16 %v1947, %v1947
      %v1958 = vld [vmem:[#allocation11] sm:$0xf]
      %v1959 = vld [vmem:[#allocation11 + $0x4] sm:$0xf]
      %v1960 = vld [vmem:[#allocation11 + $0x8] sm:$0xf]
      %v1961 = vld [vmem:[#allocation11 + $0xc] sm:$0xf]
      %v1962 = vld [vmem:[#allocation11 + $0x10] sm:$0xf]
      %v1963 = vld [vmem:[#allocation11 + $0x14] sm:$0xf]
      %v1964 = vld [vmem:[#allocation11 + $0x18] sm:$0xf]
      %v1965 = vld [vmem:[#allocation11 + $0x1c] sm:$0xf]
      %v1966 = vld [vmem:[#allocation11 + $0x20] sm:$0xf]
      %v1967 = vld [vmem:[#allocation11 + $0x24] sm:$0xf]
      %v1968 = vld [vmem:[#allocation11 + $0x28] sm:$0xf]
      %v1969 = vld [vmem:[#allocation11 + $0x2c] sm:$0xf]
      %v1970 = vld [vmem:[#allocation11 + $0x30] sm:$0xf]
      %v1971 = vld [vmem:[#allocation11 + $0x34] sm:$0xf]
      %v1972 = vld [vmem:[#allocation11 + $0x38] sm:$0xf]
      %v1973 = vld [vmem:[#allocation11 + $0x3c] sm:$0xf]
      %v1974 = vld [vmem:[#allocation11 + $0x40] sm:$0xf]
      %v1975 = vld [vmem:[#allocation11 + $0x44] sm:$0xf]
      %v1976 = vld [vmem:[#allocation11 + $0x48] sm:$0xf]
      %v1977 = vld [vmem:[#allocation11 + $0x4c] sm:$0xf]
      %v1978 = vld [vmem:[#allocation11 + $0x50] sm:$0xf]
      %v1979 = vld [vmem:[#allocation11 + $0x54] sm:$0xf]
      %v1980 = vld [vmem:[#allocation11 + $0x58] sm:$0xf]
      %v1981 = vld [vmem:[#allocation11 + $0x5c] sm:$0xf]
      %v1982 = vld [vmem:[#allocation11 + $0x60] sm:$0xf]
      %v1983 = vld [vmem:[#allocation11 + $0x64] sm:$0xf]
      %v1984 = vld [vmem:[#allocation11 + $0x68] sm:$0xf]
      %v1985 = vld [vmem:[#allocation11 + $0x6c] sm:$0xf]
      %v1986 = vld [vmem:[#allocation11 + $0x70] sm:$0xf]
      %v1987 = vld [vmem:[#allocation11 + $0x74] sm:$0xf]
      %v1988 = vld [vmem:[#allocation11 + $0x78] sm:$0xf]
      %v1989 = vld [vmem:[#allocation11 + $0x7c] sm:$0xf]
      %v1990 = vld [vmem:[#allocation11 + $0x80] sm:$0xf]
      %v1991 = vld [vmem:[#allocation11 + $0x84] sm:$0xf]
      %v1992 = vld [vmem:[#allocation11 + $0x88] sm:$0xf]
      %v1993 = vld [vmem:[#allocation11 + $0x8c] sm:$0xf]
      %v1994 = vld [vmem:[#allocation11 + $0x90] sm:$0xf]
      %v1995 = vld [vmem:[#allocation11 + $0x94] sm:$0xf]
      %v1996 = vld [vmem:[#allocation11 + $0x98] sm:$0xf]
      %v1997 = vld [vmem:[#allocation11 + $0x9c] sm:$0xf]
      %v1998 = vld [vmem:[#allocation11 + $0xa0] sm:$0xf]
      %v1999 = vld [vmem:[#allocation11 + $0xa4] sm:$0xf]
      %v2000 = vld [vmem:[#allocation11 + $0xa8] sm:$0xf]
      %v2001 = vld [vmem:[#allocation11 + $0xac] sm:$0xf]
      %v2002 = vld [vmem:[#allocation11 + $0xb0] sm:$0xf]
      %v2003 = vld [vmem:[#allocation11 + $0xb4] sm:$0xf]
      %v2004 = vld [vmem:[#allocation11 + $0xb8] sm:$0xf]
      %v2005 = vld [vmem:[#allocation11 + $0xbc] sm:$0xf]
      %v2006 = vld [vmem:[#allocation11 + $0xc0] sm:$0xf]
      %v2007 = vld [vmem:[#allocation11 + $0xc4] sm:$0xf]
      %v2008 = vld [vmem:[#allocation11 + $0xc8] sm:$0xf]
      %v2009 = vld [vmem:[#allocation11 + $0xcc] sm:$0xf]
      %v2010 = vld [vmem:[#allocation11 + $0xd0] sm:$0xf]
      %v2011 = vld [vmem:[#allocation11 + $0xd4] sm:$0xf]
      %v2012 = vld [vmem:[#allocation11 + $0xd8] sm:$0xf]
      %v2013 = vld [vmem:[#allocation11 + $0xdc] sm:$0xf]
      %v2014 = vld [vmem:[#allocation11 + $0xe0] sm:$0xf]
      %v2015 = vld [vmem:[#allocation11 + $0xe4] sm:$0xf]
      %v2016 = vld [vmem:[#allocation11 + $0xe8] sm:$0xf]
      %v2017 = vld [vmem:[#allocation11 + $0xec] sm:$0xf]
      %v2018 = vld [vmem:[#allocation11 + $0xf0] sm:$0xf]
      %v2019 = vld [vmem:[#allocation11 + $0xf4] sm:$0xf]
      %v2020 = vld [vmem:[#allocation11 + $0xf8] sm:$0xf]
      %v2021 = vld [vmem:[#allocation11 + $0xfc] sm:$0xf]
      %v2022 = vld [vmem:[%s4] sm:$0x1]
      %v2024 = vperm.slane %v2022, 0
      %v2090 = vunpack.c.l.b16 %v1958
      %v2091 = vunpack.c.l.b16 %v1959
      %v2092 = vunpack.c.l.b16 %v1960
      %v2093 = vunpack.c.l.b16 %v1961
      %v2094 = vunpack.c.l.b16 %v1962
      %v2095 = vunpack.c.l.b16 %v1963
      %v2096 = vunpack.c.l.b16 %v1964
      %v2097 = vunpack.c.l.b16 %v1965
      %v2098 = vunpack.c.l.b16 %v1966
      %v2099 = vunpack.c.l.b16 %v1967
      %v2100 = vunpack.c.l.b16 %v1968
      %v2101 = vunpack.c.l.b16 %v1969
      %v2102 = vunpack.c.l.b16 %v1970
      %v2103 = vunpack.c.l.b16 %v1971
      %v2104 = vunpack.c.l.b16 %v1972
      %v2105 = vunpack.c.l.b16 %v1973
      %v2106 = vunpack.c.l.b16 %v1974
      %v2107 = vunpack.c.l.b16 %v1975
      %v2108 = vunpack.c.l.b16 %v1976
      %v2109 = vunpack.c.l.b16 %v1977
      %v2110 = vunpack.c.l.b16 %v1978
      %v2111 = vunpack.c.l.b16 %v1979
      %v2112 = vunpack.c.l.b16 %v1980
      %v2113 = vunpack.c.l.b16 %v1981
      %v2114 = vunpack.c.l.b16 %v1982
      %v2115 = vunpack.c.l.b16 %v1983
      %v2116 = vunpack.c.l.b16 %v1984
      %v2117 = vunpack.c.l.b16 %v1985
      %v2118 = vunpack.c.l.b16 %v1986
      %v2119 = vunpack.c.l.b16 %v1987
      %v2120 = vunpack.c.l.b16 %v1988
      %v2121 = vunpack.c.l.b16 %v1989
      %v2122 = vunpack.c.l.b16 %v1990
      %v2123 = vunpack.c.l.b16 %v1991
      %v2124 = vunpack.c.l.b16 %v1992
      %v2125 = vunpack.c.l.b16 %v1993
      %v2126 = vunpack.c.l.b16 %v1994
      %v2127 = vunpack.c.l.b16 %v1995
      %v2128 = vunpack.c.l.b16 %v1996
      %v2129 = vunpack.c.l.b16 %v1997
      %v2130 = vunpack.c.l.b16 %v1998
      %v2131 = vunpack.c.l.b16 %v1999
      %v2132 = vunpack.c.l.b16 %v2000
      %v2133 = vunpack.c.l.b16 %v2001
      %v2134 = vunpack.c.l.b16 %v2002
      %v2135 = vunpack.c.l.b16 %v2003
      %v2136 = vunpack.c.l.b16 %v2004
      %v2137 = vunpack.c.l.b16 %v2005
      %v2138 = vunpack.c.l.b16 %v2006
      %v2139 = vunpack.c.l.b16 %v2007
      %v2140 = vunpack.c.l.b16 %v2008
      %v2141 = vunpack.c.l.b16 %v2009
      %v2142 = vunpack.c.l.b16 %v2010
      %v2143 = vunpack.c.l.b16 %v2011
      %v2144 = vunpack.c.l.b16 %v2012
      %v2145 = vunpack.c.l.b16 %v2013
      %v2146 = vunpack.c.l.b16 %v2014
      %v2147 = vunpack.c.l.b16 %v2015
      %v2148 = vunpack.c.l.b16 %v2016
      %v2149 = vunpack.c.l.b16 %v2017
      %v2150 = vunpack.c.l.b16 %v2018
      %v2151 = vunpack.c.l.b16 %v2019
      %v2152 = vunpack.c.l.b16 %v2020
      %v2153 = vunpack.c.l.b16 %v2021
      %v2154 = vpack.c.b16 %v2091, %v2090
      %v2155 = vpack.c.b16 %v2093, %v2092
      %v2156 = vpack.c.b16 %v2095, %v2094
      %v2157 = vpack.c.b16 %v2097, %v2096
      %v2158 = vpack.c.b16 %v2099, %v2098
      %v2159 = vpack.c.b16 %v2101, %v2100
      %v2160 = vpack.c.b16 %v2103, %v2102
      %v2161 = vpack.c.b16 %v2105, %v2104
      %v2162 = vpack.c.b16 %v2107, %v2106
      %v2163 = vpack.c.b16 %v2109, %v2108
      %v2164 = vpack.c.b16 %v2111, %v2110
      %v2165 = vpack.c.b16 %v2113, %v2112
      %v2166 = vpack.c.b16 %v2115, %v2114
      %v2167 = vpack.c.b16 %v2117, %v2116
      %v2168 = vpack.c.b16 %v2119, %v2118
      %v2169 = vpack.c.b16 %v2121, %v2120
      %v2170 = vpack.c.b16 %v2123, %v2122
      %v2171 = vpack.c.b16 %v2125, %v2124
      %v2172 = vpack.c.b16 %v2127, %v2126
      %v2173 = vpack.c.b16 %v2129, %v2128
      %v2174 = vpack.c.b16 %v2131, %v2130
      %v2175 = vpack.c.b16 %v2133, %v2132
      %v2176 = vpack.c.b16 %v2135, %v2134
      %v2177 = vpack.c.b16 %v2137, %v2136
      %v2178 = vpack.c.b16 %v2139, %v2138
      %v2179 = vpack.c.b16 %v2141, %v2140
      %v2180 = vpack.c.b16 %v2143, %v2142
      %v2181 = vpack.c.b16 %v2145, %v2144
      %v2182 = vpack.c.b16 %v2147, %v2146
      %v2183 = vpack.c.b16 %v2149, %v2148
      %v2184 = vpack.c.b16 %v2151, %v2150
      %v2185 = vpack.c.b16 %v2153, %v2152
      %2218 = vmatpush.bf16.msra.mxu0 %v2161
      %2219 = vmatpush.bf16.msra.mxu0 %v2160
      %2220 = vmatpush.bf16.msra.mxu0 %v2159
      %2221 = vmatpush.bf16.msra.mxu0 %v2158
      %2222 = vmatpush.bf16.msra.mxu0 %v2157
      %2223 = vmatpush.bf16.msra.mxu0 %v2156
      %2224 = vmatpush.bf16.msra.mxu0 %v2155
      %2225 = vmatpush.bf16.msra.mxu0 %v2154
      %2226 = vmatmul.bf16.gmra.mxu0 %v1954
      %v2227 = vpop.f32.mrf.mxu0
      %v2228 = vadd.f32 %v2024, %v2227
      %v2229 = vpop.f32.mrf.mxu0
      %2230 = vdwg.mxu0
      %2231 = vmatpush.bf16.msra.mxu0 %v2169
      %2232 = vmatpush.bf16.msra.mxu0 %v2168
      %2233 = vmatpush.bf16.msra.mxu0 %v2167
      %2234 = vmatpush.bf16.msra.mxu0 %v2166
      %2235 = vmatpush.bf16.msra.mxu0 %v2165
      %2236 = vmatpush.bf16.msra.mxu0 %v2164
      %2237 = vmatpush.bf16.msra.mxu0 %v2163
      %2238 = vmatpush.bf16.msra.mxu0 %v2162
      %2239 = vmatmul.bf16.gmra.mxu0 %v1955
      %v2240 = vpop.f32.mrf.mxu0
      %v2241 = vadd.f32 %v2228, %v2240
      %v2242 = vpop.f32.mrf.mxu0
      %2243 = vdwg.mxu0
      %2244 = vmatpush.bf16.msra.mxu0 %v2177
      %2245 = vmatpush.bf16.msra.mxu0 %v2176
      %2246 = vmatpush.bf16.msra.mxu0 %v2175
      %2247 = vmatpush.bf16.msra.mxu0 %v2174
      %2248 = vmatpush.bf16.msra.mxu0 %v2173
      %2249 = vmatpush.bf16.msra.mxu0 %v2172
      %2250 = vmatpush.bf16.msra.mxu0 %v2171
      %2251 = vmatpush.bf16.msra.mxu0 %v2170
      %2252 = vmatmul.bf16.gmra.mxu0 %v1956
      %v2253 = vpop.f32.mrf.mxu0
      %v2254 = vadd.f32 %v2241, %v2253
      %v2255 = vpop.f32.mrf.mxu0
      %2256 = vdwg.mxu0
      %2257 = vmatpush.bf16.msra.mxu0 %v2185
      %2258 = vmatpush.bf16.msra.mxu0 %v2184
      %2259 = vmatpush.bf16.msra.mxu0 %v2183
      %2260 = vmatpush.bf16.msra.mxu0 %v2182
      %2261 = vmatpush.bf16.msra.mxu0 %v2181
      %2262 = vmatpush.bf16.msra.mxu0 %v2180
      %2263 = vmatpush.bf16.msra.mxu0 %v2179
      %2264 = vmatpush.bf16.msra.mxu0 %v2178
      %2265 = vmatmul.bf16.gmra.mxu0 %v1957
      %v2266 = vpop.f32.mrf.mxu0
      %v2267 = vadd.f32 %v2254, %v2266
      %v2268 = vpop.f32.mrf.mxu0
      %2269 = vdwg.mxu0
      %v2270 = vmax.f32 %v2267, 0.0
      %v2271 = vld [vmem:[#allocation13] sm:$0xff]
      %v2273 = vrot.slane %v2270, 1
      %v2274 = vperm.slane %v2270, 0
      %v2275 = vperm.slane %v2273, 0
      %v2278 = vadd.f32 %v2271, %v2274
      %v2279 = vadd.f32 %v2271, %v2275
      %v2280 = vpack.c.bf16 %v2279, %v2278
      %v2281 = vld [vmem:[#allocation14] sm:$0xf]
      %v2282 = vld [vmem:[#allocation14 + $0x4] sm:$0xf]
      %v2283 = vld [vmem:[#allocation14 + $0x8] sm:$0xf]
      %v2284 = vld [vmem:[#allocation14 + $0xc] sm:$0xf]
      %v2285 = vld [vmem:[#allocation14 + $0x10] sm:$0xf]
      %v2286 = vld [vmem:[#allocation14 + $0x14] sm:$0xf]
      %v2287 = vld [vmem:[#allocation14 + $0x18] sm:$0xf]
      %v2288 = vld [vmem:[#allocation14 + $0x1c] sm:$0xf]
      %v2289 = vld [vmem:[#allocation14 + $0x20] sm:$0xf]
      %v2290 = vld [vmem:[#allocation14 + $0x24] sm:$0xf]
      %v2291 = vld [vmem:[#allocation14 + $0x28] sm:$0xf]
      %v2292 = vld [vmem:[#allocation14 + $0x2c] sm:$0xf]
      %v2293 = vld [vmem:[#allocation14 + $0x30] sm:$0xf]
      %v2294 = vld [vmem:[#allocation14 + $0x34] sm:$0xf]
      %v2295 = vld [vmem:[#allocation14 + $0x38] sm:$0xf]
      %v2296 = vld [vmem:[#allocation14 + $0x3c] sm:$0xf]
      %v2297 = vld [vmem:[%s7] sm:$0x1]
      %v2299 = vperm.slane %v2297, 0
      %v2317 = vunpack.c.l.b16 %v2281
      %v2318 = vunpack.c.l.b16 %v2282
      %v2319 = vunpack.c.l.b16 %v2283
      %v2320 = vunpack.c.l.b16 %v2284
      %v2321 = vunpack.c.l.b16 %v2285
      %v2322 = vunpack.c.l.b16 %v2286
      %v2323 = vunpack.c.l.b16 %v2287
      %v2324 = vunpack.c.l.b16 %v2288
      %v2325 = vunpack.c.l.b16 %v2289
      %v2326 = vunpack.c.l.b16 %v2290
      %v2327 = vunpack.c.l.b16 %v2291
      %v2328 = vunpack.c.l.b16 %v2292
      %v2329 = vunpack.c.l.b16 %v2293
      %v2330 = vunpack.c.l.b16 %v2294
      %v2331 = vunpack.c.l.b16 %v2295
      %v2332 = vunpack.c.l.b16 %v2296
      %v2333 = vpack.c.b16 %v2318, %v2317
      %v2334 = vpack.c.b16 %v2320, %v2319
      %v2335 = vpack.c.b16 %v2322, %v2321
      %v2336 = vpack.c.b16 %v2324, %v2323
      %v2337 = vpack.c.b16 %v2326, %v2325
      %v2338 = vpack.c.b16 %v2328, %v2327
      %v2339 = vpack.c.b16 %v2330, %v2329
      %v2340 = vpack.c.b16 %v2332, %v2331
      %2349 = vmatpush.bf16.msra.mxu0 %v2340
      %2350 = vmatpush.bf16.msra.mxu0 %v2339
      %2351 = vmatpush.bf16.msra.mxu0 %v2338
      %2352 = vmatpush.bf16.msra.mxu0 %v2337
      %2353 = vmatpush.bf16.msra.mxu0 %v2336
      %2354 = vmatpush.bf16.msra.mxu0 %v2335
      %2355 = vmatpush.bf16.msra.mxu0 %v2334
      %2356 = vmatpush.bf16.msra.mxu0 %v2333
      %2357 = vmatmul.bf16.gmra.mxu0 %v2280
      %v2358 = vpop.f32.mrf.mxu0
      %v2359 = vadd.f32 %v2299, %v2358
      %v2360 = vpop.f32.mrf.mxu0
      %v2361 = vadd.f32 %v2299, %v2360
      %2362 = vdwg.mxu0
      %v2363 = vmax.f32 %v2359, 0.0
      %v2364 = vmax.f32 %v2361, 0.0
      %v2365 = vrot.slane %v2363, 4
      %v2366 = vadd.f32 %v2363, %v2365
      %v2367 = vrot.slane %v2366, 2
      %v2368 = vadd.f32 %v2366, %v2367
      %v2369 = vrot.slane %v2368, 1
      %v2370 = vadd.f32 %v2368, %v2369
      %v2371 = vrot.slane %v2364, 4
      %v2372 = vadd.f32 %v2364, %v2371
      %v2373 = vrot.slane %v2372, 2
      %v2374 = vadd.f32 %v2372, %v2373
      %v2375 = vrot.slane %v2374, 1
      %v2376 = vadd.f32 %v2374, %v2375
      %v2377 = vrcp.pop 8.0
      %v2378 = vmul.f32 8.0, %v2377
      %v2379 = vsub.f32 1.0, %v2378
      %v2380 = vmul.f32 %v2377, %v2379
      %v2381 = vadd.f32 %v2377, %v2380
      %vm2382 = vweird.f32 %v2377
      %v2383 = vsel %vm2382, %v2377, %v2381
      %v2384 = vmul.f32 %v2370, %v2383
      %v2385 = vmul.f32 %v2376, %v2383
      %v2388 = vsel %vm1680, %v2385, %v2384
      %2390 = vst [vmem:[#allocation17] sm:$0x3] %v2388
    $region65: #{tpu_custom_call.1} parent=1 // pred_fallthru
      _
    // Predicated region
    $region66: #{tpu_custom_call.1} parent=1 // pred_check
      _
    $region67: #{tpu_custom_call.1} parent=1 // pred_check_branch
      %2392 = sbr.rel (0) target = $region69
    $region68: #{tpu_custom_call.1} parent=1 // pred_region
      %2394 = vsyncadd [#allocation7], 0
      %s2395 = sshll.u32 [#allocation16], 4
      %s2396 = int_to_ptr.vmem [resolvable:$true] %s2395
      %s2397 = sshll.u32 %s8, 4
      %s2398 = int_to_ptr.hbm [resolvable:$true] %s2397
      %2403 = dma.vmem_to_hbm [thread:$0]  %s2396, 2048, %s2398, [#allocation7], 64, 64, 4
    $region69: #{tpu_custom_call.1} parent=1 // pred_fallthru
      _
    // Predicated region
    $region70: #{tpu_custom_call.1} parent=1 // pred_check
      _
    $region71: #{tpu_custom_call.1} parent=1 // pred_check_branch
      %2405 = sbr.rel (0) target = $region73
    $region72: #{tpu_custom_call.1} parent=1 // pred_region
      %2407 = vsyncadd [#allocation18], 0
      %s2409 = sshll.u32 [#allocation17], 4
      %s2410 = int_to_ptr.vmem [resolvable:$true] %s2409
      %s2411 = sshll.u32 %s9, 4
      %s2412 = int_to_ptr.hbm [resolvable:$true] %s2411
      %2414 = dma.vmem_to_hbm [thread:$0]  %s2410, 32, %s2412, [#allocation18]
    $region73: #{tpu_custom_call.1} parent=1 // pred_fallthru
      _
    // Predicated region
    $region74: #{tpu_custom_call.1} parent=1 // pred_check
      _
    $region75: #{tpu_custom_call.1} parent=1 // pred_check_branch
      %2416 = sbr.rel (0) target = $region77
    $region76: #{tpu_custom_call.1} parent=1 // pred_region
      %2418 = dma.done [#allocation7], 2048
    $region77: #{tpu_custom_call.1} parent=1 // pred_fallthru
      _
    // Predicated region
    $region78: #{tpu_custom_call.1} parent=1 // pred_check
      _
    $region79: #{tpu_custom_call.1} parent=1 // pred_check_branch
      %2420 = sbr.rel (0) target = $region81
    $region80: #{tpu_custom_call.1} parent=1 // pred_region
      %2422 = dma.done [#allocation18], 32
    $region81: #{tpu_custom_call.1} parent=1 // pred_fallthru
      _
    %2423 = vsyncpa [#allocation6], 1
    %2424 = vsyncpa [#allocation9], 1
    %2425 = vsyncpa [#allocation12], 1
    %2426 = vsyncpa [#allocation15], 1
    %2427 = vsyncpa [#allocation7], 1
    %2428 = vsyncpa [#allocation18], 1

</llo_original>
